<compile_context>
chip_gen: v7x
topology: tpu7x:2x2x1
jax: 0.10.0
libtpu: 0.0.40
codegen_flags: <defaults>
</compile_context>

<pallas_src>
import functools

import jax
import jax.numpy as jnp
from jax import lax
from jax.experimental import pallas as pl
from jax.experimental.pallas import tpu as pltpu


def _merge_kernel(bb, P, T,
                  fids_ref,    # SMEM (B*P,) int32: old-table row to fetch, -1 = skip
                  nf_ref,      # SMEM (G,)   int32: number of fetches in this block
                  x_ref,       # VMEM (bb, T, D)      multimodal frames (native dtype)
                  sel_ref,     # VMEM (bb, T+1, 1) i32 feature codes: 2=eos, 1=frame, 0=pad
                  psel_ref,    # VMEM (bb, P, 1)  i32 prompt codes: 2=new-tok, 1=old-tok, 0=pad
                  oh_ref,      # VMEM (bb, P, Vn)     one-hot over the new-token vocab
                  spec_ref,    # VMEM (2, D)          [pad_emb ; eos_emb] in out dtype
                  newtab_ref,  # VMEM (Vn, D)         tiny new-token table
                  old_hbm,     # HBM  (V_old, D)      pretrained table (pl.ANY)
                  out_ref,     # VMEM (bb, P+T+1, D)
                  gath_ref,    # VMEM scratch (bb*P, D) gathered old-table rows
                  sem):        # single shared DMA semaphore (1,)
    g = pl.program_id(0)
    D = x_ref.shape[-1]
    Vn = newtab_ref.shape[0]

    # ---- scalar reads up front (before any DMA wait: keeps SMEM forwarding).
    base = g * (bb * P)
    fids = [fids_ref[base + j] for j in range(bb * P)]
    n_fetch = nf_ref[g]

    # ---- 1) issue the prompt row-gather DMAs (valid old-vocab tokens only).
    #      Branchless table choice: every copy reads the old table; pads and
    #      new-vocab tokens are skipped (handled from VMEM below).  All copies
    #      signal one shared semaphore.
    # TODO(synk): for very large block_b*P, chunk this loop (~16 outstanding
    #             DMAs) to limit descriptor-queue pressure.
    for j in range(bb * P):
        fid = fids[j]

        @pl.when(fid >= 0)
        def _(fid=fid, j=j):
            pltpu.make_async_copy(old_hbm.at[pl.ds(fid, 1)],
                                  gath_ref.at[pl.ds(j, 1)],
                                  sem.at[0]).start()

    # ---- 2) feature region: independent of the gather, so it runs while the
    #      row-fetch DMAs are in flight.  Selects stay in the native dtype.
    pad_row = spec_ref[pl.ds(0, 1), :].reshape(1, 1, D)       # (1, 1, D)
    eos_row = spec_ref[pl.ds(1, 1), :].reshape(1, 1, D)       # (1, 1, D)

    sel_t = sel_ref[:, pl.ds(0, T), :]                        # (bb, T, 1)
    xb = x_ref[...]                                           # (bb, T, D)
    feat = jnp.where(sel_t == 2, eos_row,
                     jnp.where(sel_t == 1, xb, pad_row))
    out_ref[:, pl.ds(P, T), :] = feat.astype(out_ref.dtype)

    sel_last = sel_ref[:, pl.ds(T, 1), :]                     # (bb, 1, 1)
    last = jnp.where(sel_last == 2, eos_row, pad_row)         # (bb, 1, D)
    out_ref[:, pl.ds(P + T, 1), :] = last.astype(out_ref.dtype)

    # ---- 3) drain exactly the issued gather completions (shared semaphore,
    #      dynamic trip count; descriptor is congruent with every real copy).
    @pl.loop(0, n_fetch)
    def _(i):
        pltpu.make_async_copy(old_hbm.at[pl.ds(0, 1)],
                              gath_ref.at[pl.ds(0, 1)],
                              sem.at[0]).wait()

    # ---- 4) prompt region: gathered old rows / tiny-table new rows / pad.
    old_rows = gath_ref[...].reshape(bb, P, D)                # (bb, P, D)
    new_rows = jnp.dot(oh_ref[...].reshape(bb * P, Vn), newtab_ref[...],
                       preferred_element_type=jnp.float32).reshape(bb, P, D)
    psel = psel_ref[...]                                      # (bb, P, 1)
    prompt = jnp.where(psel == 2, new_rows.astype(out_ref.dtype),
                       jnp.where(psel == 1, old_rows.astype(out_ref.dtype),
                                 pad_row))
    out_ref[:, pl.ds(0, P), :] = prompt.astype(out_ref.dtype)


def special_tokens_embeddings_forward(x, padding_mask, src_prompt, prompt_mask,
                                      old_table, new_table,
                                      pad_idx=1, eos_idx=2, block_b=1,
                                      vmem_limit_bytes=None):
    """Pallas implementation of SpecialTokensEmbeddings.forward.

    pad_idx / eos_idx must be static Python ints.  For best store layout keep
    P (prompt length) a multiple of 8 and D a multiple of 128 in production
    shapes (pad the prompt with pad tokens upstream if necessary).
    """
    assert isinstance(pad_idx, int) and isinstance(eos_idx, int)
    B, T, D = x.shape
    P = src_prompt.shape[1]
    L = P + T + 1
    old_V = old_table.shape[0]
    new_V = new_table.shape[0]
    assert old_table.dtype == new_table.dtype
    assert B % block_b == 0
    G = B // block_b

    mx = padding_mask.astype(jnp.int32)                         # (B, T)
    mp = prompt_mask.astype(jnp.int32)                          # (B, P)
    lengths = mx.sum(axis=1).astype(jnp.int32)                  # (B,)

    # Clamp ids so no DMA can read outside the vocab tables.
    ids = jnp.clip(src_prompt.astype(jnp.int32), 0, old_V + new_V - 1)
    is_new = ids >= old_V
    # Prompt codes: 2 = valid new-vocab token, 1 = valid old-vocab token, 0 = pad.
    psel = jnp.where(mp > 0, jnp.where(is_new, 2, 1), 0).astype(jnp.int32)

    # Flattened 1D SMEM gather plan (-1 = skip) + per-block fetch counts.
    fetch_ids = jnp.where(psel == 1, ids, -1).reshape(-1).astype(jnp.int32)   # (B*P,)
    nfetch = (psel == 1).astype(jnp.int32).reshape(G, block_b * P).sum(axis=1)

    # One-hot over the (tiny) new-token vocab, in table dtype, for the in-kernel
    # new_rows = one_hot @ new_table reconstruction.
    oh = (jnp.clip(ids - old_V, 0, new_V - 1)[..., None]
          == jnp.arange(new_V, dtype=jnp.int32)).astype(old_table.dtype)       # (B, P, Vn)

    # Feature-region select codes over the EOS-extended frame axis:
    # 2 = EOS position (pos == sum(mask)), 1 = real frame, 0 = pad.
    pos = jnp.arange(T + 1, dtype=jnp.int32)[None, :]
    m_ext = jnp.concatenate([mx, jnp.zeros((B, 1), jnp.int32)], axis=1)        # (B, T+1)
    sel = jnp.where(pos == lengths[:, None], 2, m_ext).astype(jnp.int32)

    def _special_row(idx):
        return old_table[idx] if idx < old_V else new_table[idx - old_V]

    specials = jnp.stack([_special_row(pad_idx), _special_row(eos_idx)],
                         axis=0).astype(x.dtype)                               # (2, D)

    # VMEM budget: only raise the scoped limit when the block working set needs
    # it; stay below v7x's 64 MiB physical VMEM.
    if vmem_limit_bytes is None:
        itm = x.dtype.itemsize
        titm = old_table.dtype.itemsize
        blk = ((block_b * T * D + block_b * L * D + 2 * D) * itm
               + (block_b * (T + 1) + block_b * P) * 4
               + block_b * P * new_V * titm + new_V * D * titm)
        est = 2 * blk + block_b * P * D * titm                 # double-buffered blocks + scratch
        est = int(est * 1.5) + (2 << 20)                       # compiler scratch / tiling headroom
        if est > (16 << 20):
            vmem_limit_bytes = min(est, 60 << 20)

    cparams = dict(dimension_semantics=("parallel",))
    if vmem_limit_bytes is not None:
        cparams["vmem_limit_bytes"] = int(vmem_limit_bytes)

    kernel = functools.partial(_merge_kernel, block_b, P, T)

    out = pl.pallas_call(
        kernel,
        grid_spec=pltpu.PrefetchScalarGridSpec(
            num_scalar_prefetch=2,
            grid=(G,),
            in_specs=[
                pl.BlockSpec((block_b, T, D), lambda g, fi, nf: (g, 0, 0)),      # x
                pl.BlockSpec((block_b, T + 1, 1), lambda g, fi, nf: (g, 0, 0)),  # sel codes
                pl.BlockSpec((block_b, P, 1), lambda g, fi, nf: (g, 0, 0)),      # prompt codes
                pl.BlockSpec((block_b, P, new_V), lambda g, fi, nf: (g, 0, 0)),  # new-vocab one-hot
                pl.BlockSpec((2, D), lambda g, fi, nf: (0, 0)),                  # pad/eos rows
                pl.BlockSpec((new_V, D), lambda g, fi, nf: (0, 0)),              # new table (VMEM)
                pl.BlockSpec(memory_space=pl.ANY),                               # old table (HBM)
            ],
            out_specs=pl.BlockSpec((block_b, L, D), lambda g, fi, nf: (g, 0, 0)),
            scratch_shapes=[
                pltpu.VMEM((block_b * P, D), old_table.dtype),
                pltpu.SemaphoreType.DMA((1,)),
            ],
        ),
        out_shape=jax.ShapeDtypeStruct((B, L, D), x.dtype),
        compiler_params=pltpu.CompilerParams(**cparams),
    )(fetch_ids, nfetch, x, sel[..., None], psel[..., None], oh, specials,
      new_table, old_table)

    # Merged padding mask: trivial int work, done in XLA instead of a second
    # (partially masked-store) kernel output.
    m_new = jnp.where(pos == lengths[:, None], 1, m_ext)
    out_mask = jnp.concatenate([mp, m_new], axis=1)
    return out, out_mask


def reference_forward(x, padding_mask, src_prompt, prompt_mask,
                      old_table, new_table, pad_idx=1, eos_idx=2):
    """Pure-JAX reference (same reconstructed semantics)."""
    table = jnp.concatenate([old_table, new_table], axis=0).astype(jnp.float32)
    B, T, D = x.shape
    mx = padding_mask.astype(jnp.int32)
    lengths = mx.sum(axis=1)
    x_ext = jnp.concatenate([x, jnp.zeros((B, 1, D), x.dtype)], axis=1)
    m_ext = jnp.concatenate([mx, jnp.zeros((B, 1), jnp.int32)], axis=1)
    pos = jnp.arange(T + 1)[None, :]
    is_eos = pos == lengths[:, None]
    x_ext = jnp.where(is_eos[..., None], table[eos_idx][None, None, :], x_ext)
    m_ext = jnp.where(is_eos, 1, m_ext)
    prompt_emb = table[src_prompt]
    out = jnp.concatenate([prompt_emb, x_ext], axis=1)
    out_mask = jnp.concatenate([prompt_mask.astype(jnp.int32), m_ext], axis=1)
    out = jnp.where(out_mask[..., None] > 0, out, table[pad_idx][None, None, :])
    return out, out_mask


if __name__ == "__main__":
    B, T, D, P = 4, 16, 32, 8
    OLD_V, NEW_V = 16, 8           # old_vocab_size, new_vocab_size
    PAD_IDX, EOS_IDX = 1, 2

    key = jax.random.PRNGKey(0)
    k1, k2, k3, k4 = jax.random.split(key, 4)

    # nn.Embedding default init ~ N(0, 1), built deterministically here.
    old_table = jax.random.normal(k1, (OLD_V, D), jnp.float32)
    new_table = jax.random.normal(k2, (NEW_V, D), jnp.float32)

    x = jax.random.normal(k3, (B, T, D), jnp.float32)

    x_lengths = jnp.array([16, 10, 3, 7], jnp.int32)
    padding_mask = (jnp.arange(T)[None, :] < x_lengths[:, None]).astype(jnp.int32)
    p_lengths = jnp.array([8, 5, 1, 8], jnp.int32)
    prompt_mask = (jnp.arange(P)[None, :] < p_lengths[:, None]).astype(jnp.int32)
    src_prompt = jax.random.randint(k4, (B, P), 0, OLD_V + NEW_V, jnp.int32)
    # Guarantee both the old-table and new-table gather paths are exercised.
    src_prompt = src_prompt.at[0, 0].set(OLD_V + 3).at[0, 1].set(3)

    out, out_mask = special_tokens_embeddings_forward(
        x, padding_mask, src_prompt, prompt_mask, old_table, new_table,
        pad_idx=PAD_IDX, eos_idx=EOS_IDX, block_b=2)
    jax.block_until_ready((out, out_mask))

    ref_out, ref_mask = reference_forward(
        x, padding_mask, src_prompt, prompt_mask, old_table, new_table,
        pad_idx=PAD_IDX, eos_idx=EOS_IDX)

    assert out.shape == (B, P + T + 1, D) and out_mask.shape == (B, P + T + 1)
    assert jnp.allclose(out, ref_out, atol=1e-5, rtol=1e-5)
    assert jnp.array_equal(out_mask, ref_mask)
    print("KERNEL_OK")
</pallas_src>

<mosaic_0001>
module attributes {stable_mosaic.version = 11 : i64} {
  func.func @_merge_kernel(%arg0: i32, %arg1: memref<32xi32, #tpu.memory_space<smem>>, %arg2: memref<2xi32, #tpu.memory_space<smem>>, %arg3: memref<2x16x32xf32, #tpu.memory_space<vmem>>, %arg4: memref<2x17x1xi32, #tpu.memory_space<vmem>>, %arg5: memref<2x8x1xi32, #tpu.memory_space<vmem>>, %arg6: memref<2x8x8xf32, #tpu.memory_space<vmem>>, %arg7: memref<2x32xf32, #tpu.memory_space<vmem>>, %arg8: memref<8x32xf32, #tpu.memory_space<vmem>>, %arg9: memref<16x32xf32, #tpu.memory_space<any>>, %arg10: memref<2x25x32xf32, #tpu.memory_space<vmem>>, %arg11: memref<16x32xf32, #tpu.memory_space<vmem>>, %arg12: memref<1x!tpu.dma_semaphore, #tpu.memory_space<semaphore_mem>>) attributes {dimension_semantics = [#tpu.dimension_semantics<parallel>], iteration_bounds = array<i64: 2>, scalar_prefetch = 2 : i64, scratch_operands = 2 : i64, tpu.core_type = #tpu.core_type<tc>, window_params = [{transform_indices = @transform_0, window_bounds = array<i64: 2, 16, 32>}, {transform_indices = @transform_1, window_bounds = array<i64: 2, 17, 1>}, {transform_indices = @transform_2, window_bounds = array<i64: 2, 8, 1>}, {transform_indices = @transform_3, window_bounds = array<i64: 2, 8, 8>}, {pipeline_mode = #tpu.pipeline_mode<synchronous>, transform_indices = @transform_4, window_bounds = array<i64: 2, 32>}, {pipeline_mode = #tpu.pipeline_mode<synchronous>, transform_indices = @transform_5, window_bounds = array<i64: 8, 32>}, {}, {transform_indices = @transform_7, window_bounds = array<i64: 2, 25, 32>}]} {
    %c16_i32 = arith.constant 16 : i32
    %0 = arith.muli %arg0, %c16_i32 : i32
    %c0_i32 = arith.constant 0 : i32
    %1 = arith.addi %0, %c0_i32 : i32
    %2 = arith.index_cast %1 : i32 to index
    %3 = memref.load %arg1[%2] : memref<32xi32, #tpu.memory_space<smem>>
    %c1_i32 = arith.constant 1 : i32
    %4 = arith.addi %0, %c1_i32 : i32
    %5 = arith.index_cast %4 : i32 to index
    %6 = memref.load %arg1[%5] : memref<32xi32, #tpu.memory_space<smem>>
    %c2_i32 = arith.constant 2 : i32
    %7 = arith.addi %0, %c2_i32 : i32
    %8 = arith.index_cast %7 : i32 to index
    %9 = memref.load %arg1[%8] : memref<32xi32, #tpu.memory_space<smem>>
    %c3_i32 = arith.constant 3 : i32
    %10 = arith.addi %0, %c3_i32 : i32
    %11 = arith.index_cast %10 : i32 to index
    %12 = memref.load %arg1[%11] : memref<32xi32, #tpu.memory_space<smem>>
    %c4_i32 = arith.constant 4 : i32
    %13 = arith.addi %0, %c4_i32 : i32
    %14 = arith.index_cast %13 : i32 to index
    %15 = memref.load %arg1[%14] : memref<32xi32, #tpu.memory_space<smem>>
    %c5_i32 = arith.constant 5 : i32
    %16 = arith.addi %0, %c5_i32 : i32
    %17 = arith.index_cast %16 : i32 to index
    %18 = memref.load %arg1[%17] : memref<32xi32, #tpu.memory_space<smem>>
    %c6_i32 = arith.constant 6 : i32
    %19 = arith.addi %0, %c6_i32 : i32
    %20 = arith.index_cast %19 : i32 to index
    %21 = memref.load %arg1[%20] : memref<32xi32, #tpu.memory_space<smem>>
    %c7_i32 = arith.constant 7 : i32
    %22 = arith.addi %0, %c7_i32 : i32
    %23 = arith.index_cast %22 : i32 to index
    %24 = memref.load %arg1[%23] : memref<32xi32, #tpu.memory_space<smem>>
    %c8_i32 = arith.constant 8 : i32
    %25 = arith.addi %0, %c8_i32 : i32
    %26 = arith.index_cast %25 : i32 to index
    %27 = memref.load %arg1[%26] : memref<32xi32, #tpu.memory_space<smem>>
    %c9_i32 = arith.constant 9 : i32
    %28 = arith.addi %0, %c9_i32 : i32
    %29 = arith.index_cast %28 : i32 to index
    %30 = memref.load %arg1[%29] : memref<32xi32, #tpu.memory_space<smem>>
    %c10_i32 = arith.constant 10 : i32
    %31 = arith.addi %0, %c10_i32 : i32
    %32 = arith.index_cast %31 : i32 to index
    %33 = memref.load %arg1[%32] : memref<32xi32, #tpu.memory_space<smem>>
    %c11_i32 = arith.constant 11 : i32
    %34 = arith.addi %0, %c11_i32 : i32
    %35 = arith.index_cast %34 : i32 to index
    %36 = memref.load %arg1[%35] : memref<32xi32, #tpu.memory_space<smem>>
    %c12_i32 = arith.constant 12 : i32
    %37 = arith.addi %0, %c12_i32 : i32
    %38 = arith.index_cast %37 : i32 to index
    %39 = memref.load %arg1[%38] : memref<32xi32, #tpu.memory_space<smem>>
    %c13_i32 = arith.constant 13 : i32
    %40 = arith.addi %0, %c13_i32 : i32
    %41 = arith.index_cast %40 : i32 to index
    %42 = memref.load %arg1[%41] : memref<32xi32, #tpu.memory_space<smem>>
    %c14_i32 = arith.constant 14 : i32
    %43 = arith.addi %0, %c14_i32 : i32
    %44 = arith.index_cast %43 : i32 to index
    %45 = memref.load %arg1[%44] : memref<32xi32, #tpu.memory_space<smem>>
    %c15_i32 = arith.constant 15 : i32
    %46 = arith.addi %0, %c15_i32 : i32
    %47 = arith.index_cast %46 : i32 to index
    %48 = memref.load %arg1[%47] : memref<32xi32, #tpu.memory_space<smem>>
    %49 = arith.index_cast %arg0 : i32 to index
    %50 = memref.load %arg2[%49] : memref<2xi32, #tpu.memory_space<smem>>
    %c0_i32_0 = arith.constant 0 : i32
    %51 = arith.cmpi sge, %3, %c0_i32_0 : i32
    %52 = arith.extui %51 : i1 to i32
    %c0_i32_1 = arith.constant 0 : i32
    %53 = arith.cmpi ne, %52, %c0_i32_1 : i32
    scf.if %53 {
      %c0_i32_72 = arith.constant 0 : i32
      %c0_i32_73 = arith.constant 0 : i32
      %158 = tpu.memref_slice %arg9[%3, %c0_i32_73] : memref<16x32xf32, #tpu.memory_space<any>> -> memref<1x32xf32, #tpu.memory_space<any>>
      %c0_i32_74 = arith.constant 0 : i32
      %c0_i32_75 = arith.constant 0 : i32
      %159 = tpu.memref_slice %arg11[%c0_i32_74, %c0_i32_75] : memref<16x32xf32, #tpu.memory_space<vmem>> -> memref<1x32xf32, #tpu.memory_space<vmem>>
      %160 = tpu.memref_slice %arg12[%c0_i32_72] : memref<1x!tpu.dma_semaphore, #tpu.memory_space<semaphore_mem>> -> memref<1x!tpu.dma_semaphore, #tpu.memory_space<semaphore_mem>>
      %161 = tpu.memref_squeeze %160 : memref<1x!tpu.dma_semaphore, #tpu.memory_space<semaphore_mem>> -> memref<!tpu.dma_semaphore, #tpu.memory_space<semaphore_mem>>
      tpu.enqueue_dma source(%158 : memref<1x32xf32, #tpu.memory_space<any>>) target(%159 : memref<1x32xf32, #tpu.memory_space<vmem>>) target_semaphore(%161 : memref<!tpu.dma_semaphore, #tpu.memory_space<semaphore_mem>>)
    } else {
    }
    %c0_i32_2 = arith.constant 0 : i32
    %54 = arith.cmpi sge, %6, %c0_i32_2 : i32
    %55 = arith.extui %54 : i1 to i32
    %c0_i32_3 = arith.constant 0 : i32
    %56 = arith.cmpi ne, %55, %c0_i32_3 : i32
    scf.if %56 {
      %c0_i32_72 = arith.constant 0 : i32
      %c0_i32_73 = arith.constant 0 : i32
      %158 = tpu.memref_slice %arg9[%6, %c0_i32_73] : memref<16x32xf32, #tpu.memory_space<any>> -> memref<1x32xf32, #tpu.memory_space<any>>
      %c1_i32_74 = arith.constant 1 : i32
      %c0_i32_75 = arith.constant 0 : i32
      %159 = tpu.memref_slice %arg11[%c1_i32_74, %c0_i32_75] : memref<16x32xf32, #tpu.memory_space<vmem>> -> memref<1x32xf32, #tpu.memory_space<vmem>>
      %160 = tpu.memref_slice %arg12[%c0_i32_72] : memref<1x!tpu.dma_semaphore, #tpu.memory_space<semaphore_mem>> -> memref<1x!tpu.dma_semaphore, #tpu.memory_space<semaphore_mem>>
      %161 = tpu.memref_squeeze %160 : memref<1x!tpu.dma_semaphore, #tpu.memory_space<semaphore_mem>> -> memref<!tpu.dma_semaphore, #tpu.memory_space<semaphore_mem>>
      tpu.enqueue_dma source(%158 : memref<1x32xf32, #tpu.memory_space<any>>) target(%159 : memref<1x32xf32, #tpu.memory_space<vmem>>) target_semaphore(%161 : memref<!tpu.dma_semaphore, #tpu.memory_space<semaphore_mem>>)
    } else {
    }
    %c0_i32_4 = arith.constant 0 : i32
    %57 = arith.cmpi sge, %9, %c0_i32_4 : i32
    %58 = arith.extui %57 : i1 to i32
    %c0_i32_5 = arith.constant 0 : i32
    %59 = arith.cmpi ne, %58, %c0_i32_5 : i32
    scf.if %59 {
      %c0_i32_72 = arith.constant 0 : i32
      %c0_i32_73 = arith.constant 0 : i32
      %158 = tpu.memref_slice %arg9[%9, %c0_i32_73] : memref<16x32xf32, #tpu.memory_space<any>> -> memref<1x32xf32, #tpu.memory_space<any>>
      %c2_i32_74 = arith.constant 2 : i32
      %c0_i32_75 = arith.constant 0 : i32
      %159 = tpu.memref_slice %arg11[%c2_i32_74, %c0_i32_75] : memref<16x32xf32, #tpu.memory_space<vmem>> -> memref<1x32xf32, #tpu.memory_space<vmem>>
      %160 = tpu.memref_slice %arg12[%c0_i32_72] : memref<1x!tpu.dma_semaphore, #tpu.memory_space<semaphore_mem>> -> memref<1x!tpu.dma_semaphore, #tpu.memory_space<semaphore_mem>>
      %161 = tpu.memref_squeeze %160 : memref<1x!tpu.dma_semaphore, #tpu.memory_space<semaphore_mem>> -> memref<!tpu.dma_semaphore, #tpu.memory_space<semaphore_mem>>
      tpu.enqueue_dma source(%158 : memref<1x32xf32, #tpu.memory_space<any>>) target(%159 : memref<1x32xf32, #tpu.memory_space<vmem>>) target_semaphore(%161 : memref<!tpu.dma_semaphore, #tpu.memory_space<semaphore_mem>>)
    } else {
    }
    %c0_i32_6 = arith.constant 0 : i32
    %60 = arith.cmpi sge, %12, %c0_i32_6 : i32
    %61 = arith.extui %60 : i1 to i32
    %c0_i32_7 = arith.constant 0 : i32
    %62 = arith.cmpi ne, %61, %c0_i32_7 : i32
    scf.if %62 {
      %c0_i32_72 = arith.constant 0 : i32
      %c0_i32_73 = arith.constant 0 : i32
      %158 = tpu.memref_slice %arg9[%12, %c0_i32_73] : memref<16x32xf32, #tpu.memory_space<any>> -> memref<1x32xf32, #tpu.memory_space<any>>
      %c3_i32_74 = arith.constant 3 : i32
      %c0_i32_75 = arith.constant 0 : i32
      %159 = tpu.memref_slice %arg11[%c3_i32_74, %c0_i32_75] : memref<16x32xf32, #tpu.memory_space<vmem>> -> memref<1x32xf32, #tpu.memory_space<vmem>>
      %160 = tpu.memref_slice %arg12[%c0_i32_72] : memref<1x!tpu.dma_semaphore, #tpu.memory_space<semaphore_mem>> -> memref<1x!tpu.dma_semaphore, #tpu.memory_space<semaphore_mem>>
      %161 = tpu.memref_squeeze %160 : memref<1x!tpu.dma_semaphore, #tpu.memory_space<semaphore_mem>> -> memref<!tpu.dma_semaphore, #tpu.memory_space<semaphore_mem>>
      tpu.enqueue_dma source(%158 : memref<1x32xf32, #tpu.memory_space<any>>) target(%159 : memref<1x32xf32, #tpu.memory_space<vmem>>) target_semaphore(%161 : memref<!tpu.dma_semaphore, #tpu.memory_space<semaphore_mem>>)
    } else {
    }
    %c0_i32_8 = arith.constant 0 : i32
    %63 = arith.cmpi sge, %15, %c0_i32_8 : i32
    %64 = arith.extui %63 : i1 to i32
    %c0_i32_9 = arith.constant 0 : i32
    %65 = arith.cmpi ne, %64, %c0_i32_9 : i32
    scf.if %65 {
      %c0_i32_72 = arith.constant 0 : i32
      %c0_i32_73 = arith.constant 0 : i32
      %158 = tpu.memref_slice %arg9[%15, %c0_i32_73] : memref<16x32xf32, #tpu.memory_space<any>> -> memref<1x32xf32, #tpu.memory_space<any>>
      %c4_i32_74 = arith.constant 4 : i32
      %c0_i32_75 = arith.constant 0 : i32
      %159 = tpu.memref_slice %arg11[%c4_i32_74, %c0_i32_75] : memref<16x32xf32, #tpu.memory_space<vmem>> -> memref<1x32xf32, #tpu.memory_space<vmem>>
      %160 = tpu.memref_slice %arg12[%c0_i32_72] : memref<1x!tpu.dma_semaphore, #tpu.memory_space<semaphore_mem>> -> memref<1x!tpu.dma_semaphore, #tpu.memory_space<semaphore_mem>>
      %161 = tpu.memref_squeeze %160 : memref<1x!tpu.dma_semaphore, #tpu.memory_space<semaphore_mem>> -> memref<!tpu.dma_semaphore, #tpu.memory_space<semaphore_mem>>
      tpu.enqueue_dma source(%158 : memref<1x32xf32, #tpu.memory_space<any>>) target(%159 : memref<1x32xf32, #tpu.memory_space<vmem>>) target_semaphore(%161 : memref<!tpu.dma_semaphore, #tpu.memory_space<semaphore_mem>>)
    } else {
    }
    %c0_i32_10 = arith.constant 0 : i32
    %66 = arith.cmpi sge, %18, %c0_i32_10 : i32
    %67 = arith.extui %66 : i1 to i32
    %c0_i32_11 = arith.constant 0 : i32
    %68 = arith.cmpi ne, %67, %c0_i32_11 : i32
    scf.if %68 {
      %c0_i32_72 = arith.constant 0 : i32
      %c0_i32_73 = arith.constant 0 : i32
      %158 = tpu.memref_slice %arg9[%18, %c0_i32_73] : memref<16x32xf32, #tpu.memory_space<any>> -> memref<1x32xf32, #tpu.memory_space<any>>
      %c5_i32_74 = arith.constant 5 : i32
      %c0_i32_75 = arith.constant 0 : i32
      %159 = tpu.memref_slice %arg11[%c5_i32_74, %c0_i32_75] : memref<16x32xf32, #tpu.memory_space<vmem>> -> memref<1x32xf32, #tpu.memory_space<vmem>>
      %160 = tpu.memref_slice %arg12[%c0_i32_72] : memref<1x!tpu.dma_semaphore, #tpu.memory_space<semaphore_mem>> -> memref<1x!tpu.dma_semaphore, #tpu.memory_space<semaphore_mem>>
      %161 = tpu.memref_squeeze %160 : memref<1x!tpu.dma_semaphore, #tpu.memory_space<semaphore_mem>> -> memref<!tpu.dma_semaphore, #tpu.memory_space<semaphore_mem>>
      tpu.enqueue_dma source(%158 : memref<1x32xf32, #tpu.memory_space<any>>) target(%159 : memref<1x32xf32, #tpu.memory_space<vmem>>) target_semaphore(%161 : memref<!tpu.dma_semaphore, #tpu.memory_space<semaphore_mem>>)
    } else {
    }
    %c0_i32_12 = arith.constant 0 : i32
    %69 = arith.cmpi sge, %21, %c0_i32_12 : i32
    %70 = arith.extui %69 : i1 to i32
    %c0_i32_13 = arith.constant 0 : i32
    %71 = arith.cmpi ne, %70, %c0_i32_13 : i32
    scf.if %71 {
      %c0_i32_72 = arith.constant 0 : i32
      %c0_i32_73 = arith.constant 0 : i32
      %158 = tpu.memref_slice %arg9[%21, %c0_i32_73] : memref<16x32xf32, #tpu.memory_space<any>> -> memref<1x32xf32, #tpu.memory_space<any>>
      %c6_i32_74 = arith.constant 6 : i32
      %c0_i32_75 = arith.constant 0 : i32
      %159 = tpu.memref_slice %arg11[%c6_i32_74, %c0_i32_75] : memref<16x32xf32, #tpu.memory_space<vmem>> -> memref<1x32xf32, #tpu.memory_space<vmem>>
      %160 = tpu.memref_slice %arg12[%c0_i32_72] : memref<1x!tpu.dma_semaphore, #tpu.memory_space<semaphore_mem>> -> memref<1x!tpu.dma_semaphore, #tpu.memory_space<semaphore_mem>>
      %161 = tpu.memref_squeeze %160 : memref<1x!tpu.dma_semaphore, #tpu.memory_space<semaphore_mem>> -> memref<!tpu.dma_semaphore, #tpu.memory_space<semaphore_mem>>
      tpu.enqueue_dma source(%158 : memref<1x32xf32, #tpu.memory_space<any>>) target(%159 : memref<1x32xf32, #tpu.memory_space<vmem>>) target_semaphore(%161 : memref<!tpu.dma_semaphore, #tpu.memory_space<semaphore_mem>>)
    } else {
    }
    %c0_i32_14 = arith.constant 0 : i32
    %72 = arith.cmpi sge, %24, %c0_i32_14 : i32
    %73 = arith.extui %72 : i1 to i32
    %c0_i32_15 = arith.constant 0 : i32
    %74 = arith.cmpi ne, %73, %c0_i32_15 : i32
    scf.if %74 {
      %c0_i32_72 = arith.constant 0 : i32
      %c0_i32_73 = arith.constant 0 : i32
      %158 = tpu.memref_slice %arg9[%24, %c0_i32_73] : memref<16x32xf32, #tpu.memory_space<any>> -> memref<1x32xf32, #tpu.memory_space<any>>
      %c7_i32_74 = arith.constant 7 : i32
      %c0_i32_75 = arith.constant 0 : i32
      %159 = tpu.memref_slice %arg11[%c7_i32_74, %c0_i32_75] : memref<16x32xf32, #tpu.memory_space<vmem>> -> memref<1x32xf32, #tpu.memory_space<vmem>>
      %160 = tpu.memref_slice %arg12[%c0_i32_72] : memref<1x!tpu.dma_semaphore, #tpu.memory_space<semaphore_mem>> -> memref<1x!tpu.dma_semaphore, #tpu.memory_space<semaphore_mem>>
      %161 = tpu.memref_squeeze %160 : memref<1x!tpu.dma_semaphore, #tpu.memory_space<semaphore_mem>> -> memref<!tpu.dma_semaphore, #tpu.memory_space<semaphore_mem>>
      tpu.enqueue_dma source(%158 : memref<1x32xf32, #tpu.memory_space<any>>) target(%159 : memref<1x32xf32, #tpu.memory_space<vmem>>) target_semaphore(%161 : memref<!tpu.dma_semaphore, #tpu.memory_space<semaphore_mem>>)
    } else {
    }
    %c0_i32_16 = arith.constant 0 : i32
    %75 = arith.cmpi sge, %27, %c0_i32_16 : i32
    %76 = arith.extui %75 : i1 to i32
    %c0_i32_17 = arith.constant 0 : i32
    %77 = arith.cmpi ne, %76, %c0_i32_17 : i32
    scf.if %77 {
      %c0_i32_72 = arith.constant 0 : i32
      %c0_i32_73 = arith.constant 0 : i32
      %158 = tpu.memref_slice %arg9[%27, %c0_i32_73] : memref<16x32xf32, #tpu.memory_space<any>> -> memref<1x32xf32, #tpu.memory_space<any>>
      %c8_i32_74 = arith.constant 8 : i32
      %c0_i32_75 = arith.constant 0 : i32
      %159 = tpu.memref_slice %arg11[%c8_i32_74, %c0_i32_75] : memref<16x32xf32, #tpu.memory_space<vmem>> -> memref<1x32xf32, #tpu.memory_space<vmem>>
      %160 = tpu.memref_slice %arg12[%c0_i32_72] : memref<1x!tpu.dma_semaphore, #tpu.memory_space<semaphore_mem>> -> memref<1x!tpu.dma_semaphore, #tpu.memory_space<semaphore_mem>>
      %161 = tpu.memref_squeeze %160 : memref<1x!tpu.dma_semaphore, #tpu.memory_space<semaphore_mem>> -> memref<!tpu.dma_semaphore, #tpu.memory_space<semaphore_mem>>
      tpu.enqueue_dma source(%158 : memref<1x32xf32, #tpu.memory_space<any>>) target(%159 : memref<1x32xf32, #tpu.memory_space<vmem>>) target_semaphore(%161 : memref<!tpu.dma_semaphore, #tpu.memory_space<semaphore_mem>>)
    } else {
    }
    %c0_i32_18 = arith.constant 0 : i32
    %78 = arith.cmpi sge, %30, %c0_i32_18 : i32
    %79 = arith.extui %78 : i1 to i32
    %c0_i32_19 = arith.constant 0 : i32
    %80 = arith.cmpi ne, %79, %c0_i32_19 : i32
    scf.if %80 {
      %c0_i32_72 = arith.constant 0 : i32
      %c0_i32_73 = arith.constant 0 : i32
      %158 = tpu.memref_slice %arg9[%30, %c0_i32_73] : memref<16x32xf32, #tpu.memory_space<any>> -> memref<1x32xf32, #tpu.memory_space<any>>
      %c9_i32_74 = arith.constant 9 : i32
      %c0_i32_75 = arith.constant 0 : i32
      %159 = tpu.memref_slice %arg11[%c9_i32_74, %c0_i32_75] : memref<16x32xf32, #tpu.memory_space<vmem>> -> memref<1x32xf32, #tpu.memory_space<vmem>>
      %160 = tpu.memref_slice %arg12[%c0_i32_72] : memref<1x!tpu.dma_semaphore, #tpu.memory_space<semaphore_mem>> -> memref<1x!tpu.dma_semaphore, #tpu.memory_space<semaphore_mem>>
      %161 = tpu.memref_squeeze %160 : memref<1x!tpu.dma_semaphore, #tpu.memory_space<semaphore_mem>> -> memref<!tpu.dma_semaphore, #tpu.memory_space<semaphore_mem>>
      tpu.enqueue_dma source(%158 : memref<1x32xf32, #tpu.memory_space<any>>) target(%159 : memref<1x32xf32, #tpu.memory_space<vmem>>) target_semaphore(%161 : memref<!tpu.dma_semaphore, #tpu.memory_space<semaphore_mem>>)
    } else {
    }
    %c0_i32_20 = arith.constant 0 : i32
    %81 = arith.cmpi sge, %33, %c0_i32_20 : i32
    %82 = arith.extui %81 : i1 to i32
    %c0_i32_21 = arith.constant 0 : i32
    %83 = arith.cmpi ne, %82, %c0_i32_21 : i32
    scf.if %83 {
      %c0_i32_72 = arith.constant 0 : i32
      %c0_i32_73 = arith.constant 0 : i32
      %158 = tpu.memref_slice %arg9[%33, %c0_i32_73] : memref<16x32xf32, #tpu.memory_space<any>> -> memref<1x32xf32, #tpu.memory_space<any>>
      %c10_i32_74 = arith.constant 10 : i32
      %c0_i32_75 = arith.constant 0 : i32
      %159 = tpu.memref_slice %arg11[%c10_i32_74, %c0_i32_75] : memref<16x32xf32, #tpu.memory_space<vmem>> -> memref<1x32xf32, #tpu.memory_space<vmem>>
      %160 = tpu.memref_slice %arg12[%c0_i32_72] : memref<1x!tpu.dma_semaphore, #tpu.memory_space<semaphore_mem>> -> memref<1x!tpu.dma_semaphore, #tpu.memory_space<semaphore_mem>>
      %161 = tpu.memref_squeeze %160 : memref<1x!tpu.dma_semaphore, #tpu.memory_space<semaphore_mem>> -> memref<!tpu.dma_semaphore, #tpu.memory_space<semaphore_mem>>
      tpu.enqueue_dma source(%158 : memref<1x32xf32, #tpu.memory_space<any>>) target(%159 : memref<1x32xf32, #tpu.memory_space<vmem>>) target_semaphore(%161 : memref<!tpu.dma_semaphore, #tpu.memory_space<semaphore_mem>>)
    } else {
    }
    %c0_i32_22 = arith.constant 0 : i32
    %84 = arith.cmpi sge, %36, %c0_i32_22 : i32
    %85 = arith.extui %84 : i1 to i32
    %c0_i32_23 = arith.constant 0 : i32
    %86 = arith.cmpi ne, %85, %c0_i32_23 : i32
    scf.if %86 {
      %c0_i32_72 = arith.constant 0 : i32
      %c0_i32_73 = arith.constant 0 : i32
      %158 = tpu.memref_slice %arg9[%36, %c0_i32_73] : memref<16x32xf32, #tpu.memory_space<any>> -> memref<1x32xf32, #tpu.memory_space<any>>
      %c11_i32_74 = arith.constant 11 : i32
      %c0_i32_75 = arith.constant 0 : i32
      %159 = tpu.memref_slice %arg11[%c11_i32_74, %c0_i32_75] : memref<16x32xf32, #tpu.memory_space<vmem>> -> memref<1x32xf32, #tpu.memory_space<vmem>>
      %160 = tpu.memref_slice %arg12[%c0_i32_72] : memref<1x!tpu.dma_semaphore, #tpu.memory_space<semaphore_mem>> -> memref<1x!tpu.dma_semaphore, #tpu.memory_space<semaphore_mem>>
      %161 = tpu.memref_squeeze %160 : memref<1x!tpu.dma_semaphore, #tpu.memory_space<semaphore_mem>> -> memref<!tpu.dma_semaphore, #tpu.memory_space<semaphore_mem>>
      tpu.enqueue_dma source(%158 : memref<1x32xf32, #tpu.memory_space<any>>) target(%159 : memref<1x32xf32, #tpu.memory_space<vmem>>) target_semaphore(%161 : memref<!tpu.dma_semaphore, #tpu.memory_space<semaphore_mem>>)
    } else {
    }
    %c0_i32_24 = arith.constant 0 : i32
    %87 = arith.cmpi sge, %39, %c0_i32_24 : i32
    %88 = arith.extui %87 : i1 to i32
    %c0_i32_25 = arith.constant 0 : i32
    %89 = arith.cmpi ne, %88, %c0_i32_25 : i32
    scf.if %89 {
      %c0_i32_72 = arith.constant 0 : i32
      %c0_i32_73 = arith.constant 0 : i32
      %158 = tpu.memref_slice %arg9[%39, %c0_i32_73] : memref<16x32xf32, #tpu.memory_space<any>> -> memref<1x32xf32, #tpu.memory_space<any>>
      %c12_i32_74 = arith.constant 12 : i32
      %c0_i32_75 = arith.constant 0 : i32
      %159 = tpu.memref_slice %arg11[%c12_i32_74, %c0_i32_75] : memref<16x32xf32, #tpu.memory_space<vmem>> -> memref<1x32xf32, #tpu.memory_space<vmem>>
      %160 = tpu.memref_slice %arg12[%c0_i32_72] : memref<1x!tpu.dma_semaphore, #tpu.memory_space<semaphore_mem>> -> memref<1x!tpu.dma_semaphore, #tpu.memory_space<semaphore_mem>>
      %161 = tpu.memref_squeeze %160 : memref<1x!tpu.dma_semaphore, #tpu.memory_space<semaphore_mem>> -> memref<!tpu.dma_semaphore, #tpu.memory_space<semaphore_mem>>
      tpu.enqueue_dma source(%158 : memref<1x32xf32, #tpu.memory_space<any>>) target(%159 : memref<1x32xf32, #tpu.memory_space<vmem>>) target_semaphore(%161 : memref<!tpu.dma_semaphore, #tpu.memory_space<semaphore_mem>>)
    } else {
    }
    %c0_i32_26 = arith.constant 0 : i32
    %90 = arith.cmpi sge, %42, %c0_i32_26 : i32
    %91 = arith.extui %90 : i1 to i32
    %c0_i32_27 = arith.constant 0 : i32
    %92 = arith.cmpi ne, %91, %c0_i32_27 : i32
    scf.if %92 {
      %c0_i32_72 = arith.constant 0 : i32
      %c0_i32_73 = arith.constant 0 : i32
      %158 = tpu.memref_slice %arg9[%42, %c0_i32_73] : memref<16x32xf32, #tpu.memory_space<any>> -> memref<1x32xf32, #tpu.memory_space<any>>
      %c13_i32_74 = arith.constant 13 : i32
      %c0_i32_75 = arith.constant 0 : i32
      %159 = tpu.memref_slice %arg11[%c13_i32_74, %c0_i32_75] : memref<16x32xf32, #tpu.memory_space<vmem>> -> memref<1x32xf32, #tpu.memory_space<vmem>>
      %160 = tpu.memref_slice %arg12[%c0_i32_72] : memref<1x!tpu.dma_semaphore, #tpu.memory_space<semaphore_mem>> -> memref<1x!tpu.dma_semaphore, #tpu.memory_space<semaphore_mem>>
      %161 = tpu.memref_squeeze %160 : memref<1x!tpu.dma_semaphore, #tpu.memory_space<semaphore_mem>> -> memref<!tpu.dma_semaphore, #tpu.memory_space<semaphore_mem>>
      tpu.enqueue_dma source(%158 : memref<1x32xf32, #tpu.memory_space<any>>) target(%159 : memref<1x32xf32, #tpu.memory_space<vmem>>) target_semaphore(%161 : memref<!tpu.dma_semaphore, #tpu.memory_space<semaphore_mem>>)
    } else {
    }
    %c0_i32_28 = arith.constant 0 : i32
    %93 = arith.cmpi sge, %45, %c0_i32_28 : i32
    %94 = arith.extui %93 : i1 to i32
    %c0_i32_29 = arith.constant 0 : i32
    %95 = arith.cmpi ne, %94, %c0_i32_29 : i32
    scf.if %95 {
      %c0_i32_72 = arith.constant 0 : i32
      %c0_i32_73 = arith.constant 0 : i32
      %158 = tpu.memref_slice %arg9[%45, %c0_i32_73] : memref<16x32xf32, #tpu.memory_space<any>> -> memref<1x32xf32, #tpu.memory_space<any>>
      %c14_i32_74 = arith.constant 14 : i32
      %c0_i32_75 = arith.constant 0 : i32
      %159 = tpu.memref_slice %arg11[%c14_i32_74, %c0_i32_75] : memref<16x32xf32, #tpu.memory_space<vmem>> -> memref<1x32xf32, #tpu.memory_space<vmem>>
      %160 = tpu.memref_slice %arg12[%c0_i32_72] : memref<1x!tpu.dma_semaphore, #tpu.memory_space<semaphore_mem>> -> memref<1x!tpu.dma_semaphore, #tpu.memory_space<semaphore_mem>>
      %161 = tpu.memref_squeeze %160 : memref<1x!tpu.dma_semaphore, #tpu.memory_space<semaphore_mem>> -> memref<!tpu.dma_semaphore, #tpu.memory_space<semaphore_mem>>
      tpu.enqueue_dma source(%158 : memref<1x32xf32, #tpu.memory_space<any>>) target(%159 : memref<1x32xf32, #tpu.memory_space<vmem>>) target_semaphore(%161 : memref<!tpu.dma_semaphore, #tpu.memory_space<semaphore_mem>>)
    } else {
    }
    %c0_i32_30 = arith.constant 0 : i32
    %96 = arith.cmpi sge, %48, %c0_i32_30 : i32
    %97 = arith.extui %96 : i1 to i32
    %c0_i32_31 = arith.constant 0 : i32
    %98 = arith.cmpi ne, %97, %c0_i32_31 : i32
    scf.if %98 {
      %c0_i32_72 = arith.constant 0 : i32
      %c0_i32_73 = arith.constant 0 : i32
      %158 = tpu.memref_slice %arg9[%48, %c0_i32_73] : memref<16x32xf32, #tpu.memory_space<any>> -> memref<1x32xf32, #tpu.memory_space<any>>
      %c15_i32_74 = arith.constant 15 : i32
      %c0_i32_75 = arith.constant 0 : i32
      %159 = tpu.memref_slice %arg11[%c15_i32_74, %c0_i32_75] : memref<16x32xf32, #tpu.memory_space<vmem>> -> memref<1x32xf32, #tpu.memory_space<vmem>>
      %160 = tpu.memref_slice %arg12[%c0_i32_72] : memref<1x!tpu.dma_semaphore, #tpu.memory_space<semaphore_mem>> -> memref<1x!tpu.dma_semaphore, #tpu.memory_space<semaphore_mem>>
      %161 = tpu.memref_squeeze %160 : memref<1x!tpu.dma_semaphore, #tpu.memory_space<semaphore_mem>> -> memref<!tpu.dma_semaphore, #tpu.memory_space<semaphore_mem>>
      tpu.enqueue_dma source(%158 : memref<1x32xf32, #tpu.memory_space<any>>) target(%159 : memref<1x32xf32, #tpu.memory_space<vmem>>) target_semaphore(%161 : memref<!tpu.dma_semaphore, #tpu.memory_space<semaphore_mem>>)
    } else {
    }
    %c0 = arith.constant 0 : index
    %c0_32 = arith.constant 0 : index
    %99 = vector.load %arg7[%c0, %c0_32] : memref<2x32xf32, #tpu.memory_space<vmem>>, vector<1x32xf32>
    %100 = vector.shape_cast %99 : vector<1x32xf32> to vector<1x1x32xf32>
    %c1 = arith.constant 1 : index
    %c0_33 = arith.constant 0 : index
    %101 = vector.load %arg7[%c1, %c0_33] : memref<2x32xf32, #tpu.memory_space<vmem>>, vector<1x32xf32>
    %102 = vector.shape_cast %101 : vector<1x32xf32> to vector<1x1x32xf32>
    %c0_34 = arith.constant 0 : index
    %c0_35 = arith.constant 0 : index
    %c0_36 = arith.constant 0 : index
    %103 = vector.load %arg4[%c0_34, %c0_35, %c0_36] : memref<2x17x1xi32, #tpu.memory_space<vmem>>, vector<2x16x1xi32>
    %c0_37 = arith.constant 0 : index
    %c0_38 = arith.constant 0 : index
    %c0_39 = arith.constant 0 : index
    %104 = vector.load %arg3[%c0_37, %c0_38, %c0_39] : memref<2x16x32xf32, #tpu.memory_space<vmem>>, vector<2x16x32xf32>
    %c2_i32_40 = arith.constant 2 : i32
    %105 = vector.broadcast %c2_i32_40 : i32 to vector<2x16x1xi32>
    %106 = arith.cmpi eq, %103, %105 : vector<2x16x1xi32>
    %c1_i32_41 = arith.constant 1 : i32
    %107 = vector.broadcast %c1_i32_41 : i32 to vector<2x16x1xi32>
    %108 = arith.cmpi eq, %103, %107 : vector<2x16x1xi32>
    %109 = vector.shape_cast %108 : vector<2x16x1xi1> to vector<2x16x1xi1>
    %110 = vector.broadcast %109 : vector<2x16x1xi1> to vector<2x16x32xi1>
    %111 = vector.shape_cast %100 : vector<1x1x32xf32> to vector<1x1x32xf32>
    %112 = vector.broadcast %111 : vector<1x1x32xf32> to vector<2x16x32xf32>
    %113 = arith.select %110, %104, %112 : vector<2x16x32xi1>, vector<2x16x32xf32>
    %114 = vector.shape_cast %106 : vector<2x16x1xi1> to vector<2x16x1xi1>
    %115 = vector.broadcast %114 : vector<2x16x1xi1> to vector<2x16x32xi1>
    %116 = vector.shape_cast %102 : vector<1x1x32xf32> to vector<1x1x32xf32>
    %117 = vector.broadcast %116 : vector<1x1x32xf32> to vector<2x16x32xf32>
    %118 = arith.select %115, %117, %113 : vector<2x16x32xi1>, vector<2x16x32xf32>
    %c0_42 = arith.constant 0 : index
    %c8 = arith.constant 8 : index
    %c0_43 = arith.constant 0 : index
    %119 = vector.load %arg10[%c0_42, %c8, %c0_43] : memref<2x25x32xf32, #tpu.memory_space<vmem>>, vector<2x16x32xf32>
    tpu.vector_store %arg10[%c0_42, %c8, %c0_43], %118 {strides = array<i32>} : memref<2x25x32xf32, #tpu.memory_space<vmem>>, vector<2x16x32xf32>,
    %c0_44 = arith.constant 0 : index
    %c16 = arith.constant 16 : index
    %c0_45 = arith.constant 0 : index
    %120 = vector.load %arg4[%c0_44, %c16, %c0_45] : memref<2x17x1xi32, #tpu.memory_space<vmem>>, vector<2x1x1xi32>
    %c2_i32_46 = arith.constant 2 : i32
    %121 = vector.broadcast %c2_i32_46 : i32 to vector<2x1x1xi32>
    %122 = arith.cmpi eq, %120, %121 : vector<2x1x1xi32>
    %123 = vector.shape_cast %122 : vector<2x1x1xi1> to vector<2x1x1xi1>
    %124 = vector.broadcast %123 : vector<2x1x1xi1> to vector<2x1x32xi1>
    %125 = vector.shape_cast %102 : vector<1x1x32xf32> to vector<1x1x32xf32>
    %126 = vector.broadcast %125 : vector<1x1x32xf32> to vector<2x1x32xf32>
    %127 = vector.shape_cast %100 : vector<1x1x32xf32> to vector<1x1x32xf32>
    %128 = vector.broadcast %127 : vector<1x1x32xf32> to vector<2x1x32xf32>
    %129 = arith.select %124, %126, %128 : vector<2x1x32xi1>, vector<2x1x32xf32>
    %c0_47 = arith.constant 0 : index
    %c24 = arith.constant 24 : index
    %c0_48 = arith.constant 0 : index
    %130 = vector.load %arg10[%c0_47, %c24, %c0_48] : memref<2x25x32xf32, #tpu.memory_space<vmem>>, vector<2x1x32xf32>
    tpu.vector_store %arg10[%c0_47, %c24, %c0_48], %129 {strides = array<i32>} : memref<2x25x32xf32, #tpu.memory_space<vmem>>, vector<2x1x32xf32>,
    %c0_i32_49 = arith.constant 0 : i32
    %131 = arith.subi %50, %c0_i32_49 : i32
    %c1_i32_50 = arith.constant 1 : i32
    %c1_i32_51 = arith.constant 1 : i32
    %132 = arith.subi %c1_i32_50, %c1_i32_51 : i32
    %133 = arith.addi %131, %132 : i32
    %c1_i32_52 = arith.constant 1 : i32
    %134 = arith.divsi %133, %c1_i32_52 : i32
    %c1_i32_53 = arith.constant 1 : i32
    %c0_i32_54 = arith.constant 0 : i32
    %c0_i32_55 = arith.constant 0 : i32
    %135 = arith.subi %134, %c0_i32_55 : i32
    %136 = arith.addi %c0_i32_55, %135 : i32
    %c1_i32_56 = arith.constant 1 : i32
    scf.for %arg13 = %c0_i32_55 to %136 step %c1_i32_56  : i32 {
      %158 = arith.muli %arg13, %c1_i32_53 : i32
      %159 = arith.addi %c0_i32_54, %158 : i32
      %c0_i32_72 = arith.constant 0 : i32
      %c0_i32_73 = arith.constant 0 : i32
      %c0_i32_74 = arith.constant 0 : i32
      %160 = tpu.memref_slice %arg9[%c0_i32_73, %c0_i32_74] : memref<16x32xf32, #tpu.memory_space<any>> -> memref<1x32xf32, #tpu.memory_space<any>>
      %c0_i32_75 = arith.constant 0 : i32
      %c0_i32_76 = arith.constant 0 : i32
      %161 = tpu.memref_slice %arg11[%c0_i32_75, %c0_i32_76] : memref<16x32xf32, #tpu.memory_space<vmem>> -> memref<1x32xf32, #tpu.memory_space<vmem>>
      %162 = tpu.memref_slice %arg12[%c0_i32_72] : memref<1x!tpu.dma_semaphore, #tpu.memory_space<semaphore_mem>> -> memref<1x!tpu.dma_semaphore, #tpu.memory_space<semaphore_mem>>
      %163 = tpu.memref_squeeze %162 : memref<1x!tpu.dma_semaphore, #tpu.memory_space<semaphore_mem>> -> memref<!tpu.dma_semaphore, #tpu.memory_space<semaphore_mem>>
      tpu.wait_dma2 semaphore(%163 : memref<!tpu.dma_semaphore, #tpu.memory_space<semaphore_mem>>) src(%160 : memref<1x32xf32, #tpu.memory_space<any>>) dst(%161 : memref<1x32xf32, #tpu.memory_space<vmem>>)
    }
    %c0_57 = arith.constant 0 : index
    %c0_58 = arith.constant 0 : index
    %137 = vector.load %arg11[%c0_57, %c0_58] : memref<16x32xf32, #tpu.memory_space<vmem>>, vector<16x32xf32>
    %138 = vector.shape_cast %137 : vector<16x32xf32> to vector<2x8x32xf32>
    %c0_59 = arith.constant 0 : index
    %c0_60 = arith.constant 0 : index
    %c0_61 = arith.constant 0 : index
    %139 = vector.load %arg6[%c0_59, %c0_60, %c0_61] : memref<2x8x8xf32, #tpu.memory_space<vmem>>, vector<2x8x8xf32>
    %140 = vector.shape_cast %139 : vector<2x8x8xf32> to vector<16x8xf32>
    %c0_62 = arith.constant 0 : index
    %c0_63 = arith.constant 0 : index
    %141 = vector.load %arg8[%c0_62, %c0_63] : memref<8x32xf32, #tpu.memory_space<vmem>>, vector<8x32xf32>
    %cst = arith.constant dense<0.000000e+00> : vector<16x32xf32>
    %142 = tpu.matmul %140, %141, %cst {dimension_numbers = #tpu.dot_dimension_numbers<[1], [0], [0], [1], [0, 0, 1, 1], [], []>} : vector<16x8xf32>, vector<8x32xf32>, vector<16x32xf32> -> vector<16x32xf32>
    %143 = vector.shape_cast %142 : vector<16x32xf32> to vector<2x8x32xf32>
    %c0_64 = arith.constant 0 : index
    %c0_65 = arith.constant 0 : index
    %c0_66 = arith.constant 0 : index
    %144 = vector.load %arg5[%c0_64, %c0_65, %c0_66] : memref<2x8x1xi32, #tpu.memory_space<vmem>>, vector<2x8x1xi32>
    %c2_i32_67 = arith.constant 2 : i32
    %145 = vector.broadcast %c2_i32_67 : i32 to vector<2x8x1xi32>
    %146 = arith.cmpi eq, %144, %145 : vector<2x8x1xi32>
    %c1_i32_68 = arith.constant 1 : i32
    %147 = vector.broadcast %c1_i32_68 : i32 to vector<2x8x1xi32>
    %148 = arith.cmpi eq, %144, %147 : vector<2x8x1xi32>
    %149 = vector.shape_cast %148 : vector<2x8x1xi1> to vector<2x8x1xi1>
    %150 = vector.broadcast %149 : vector<2x8x1xi1> to vector<2x8x32xi1>
    %151 = vector.shape_cast %100 : vector<1x1x32xf32> to vector<1x1x32xf32>
    %152 = vector.broadcast %151 : vector<1x1x32xf32> to vector<2x8x32xf32>
    %153 = arith.select %150, %138, %152 : vector<2x8x32xi1>, vector<2x8x32xf32>
    %154 = vector.shape_cast %146 : vector<2x8x1xi1> to vector<2x8x1xi1>
    %155 = vector.broadcast %154 : vector<2x8x1xi1> to vector<2x8x32xi1>
    %156 = arith.select %155, %143, %153 : vector<2x8x32xi1>, vector<2x8x32xf32>
    %c0_69 = arith.constant 0 : index
    %c0_70 = arith.constant 0 : index
    %c0_71 = arith.constant 0 : index
    %157 = vector.load %arg10[%c0_69, %c0_70, %c0_71] : memref<2x25x32xf32, #tpu.memory_space<vmem>>, vector<2x8x32xf32>
    tpu.vector_store %arg10[%c0_69, %c0_70, %c0_71], %156 {strides = array<i32>} : memref<2x25x32xf32, #tpu.memory_space<vmem>>, vector<2x8x32xf32>,
    return
  }
  func.func @transform_0(%arg0: i32, %arg1: memref<32xi32, #tpu.memory_space<smem>>, %arg2: memref<2xi32, #tpu.memory_space<smem>>) -> (i32, i32, i32) {
    %c0_i32 = arith.constant 0 : i32
    %c0_i32_0 = arith.constant 0 : i32
    %c0_i32_1 = arith.constant 0 : i32
    return %arg0, %c0_i32, %c0_i32_0 : i32, i32, i32
  }
  func.func @transform_1(%arg0: i32, %arg1: memref<32xi32, #tpu.memory_space<smem>>, %arg2: memref<2xi32, #tpu.memory_space<smem>>) -> (i32, i32, i32) {
    %c0_i32 = arith.constant 0 : i32
    %c0_i32_0 = arith.constant 0 : i32
    %c0_i32_1 = arith.constant 0 : i32
    return %arg0, %c0_i32, %c0_i32_0 : i32, i32, i32
  }
  func.func @transform_2(%arg0: i32, %arg1: memref<32xi32, #tpu.memory_space<smem>>, %arg2: memref<2xi32, #tpu.memory_space<smem>>) -> (i32, i32, i32) {
    %c0_i32 = arith.constant 0 : i32
    %c0_i32_0 = arith.constant 0 : i32
    %c0_i32_1 = arith.constant 0 : i32
    return %arg0, %c0_i32, %c0_i32_0 : i32, i32, i32
  }
  func.func @transform_3(%arg0: i32, %arg1: memref<32xi32, #tpu.memory_space<smem>>, %arg2: memref<2xi32, #tpu.memory_space<smem>>) -> (i32, i32, i32) {
    %c0_i32 = arith.constant 0 : i32
    %c0_i32_0 = arith.constant 0 : i32
    %c0_i32_1 = arith.constant 0 : i32
    return %arg0, %c0_i32, %c0_i32_0 : i32, i32, i32
  }
  func.func @transform_4(%arg0: i32, %arg1: memref<32xi32, #tpu.memory_space<smem>>, %arg2: memref<2xi32, #tpu.memory_space<smem>>) -> (i32, i32) {
    %c0_i32 = arith.constant 0 : i32
    %c0_i32_0 = arith.constant 0 : i32
    %c0_i32_1 = arith.constant 0 : i32
    return %c0_i32, %c0_i32_0 : i32, i32
  }
  func.func @transform_5(%arg0: i32, %arg1: memref<32xi32, #tpu.memory_space<smem>>, %arg2: memref<2xi32, #tpu.memory_space<smem>>) -> (i32, i32) {
    %c0_i32 = arith.constant 0 : i32
    %c0_i32_0 = arith.constant 0 : i32
    %c0_i32_1 = arith.constant 0 : i32
    return %c0_i32, %c0_i32_0 : i32, i32
  }
  func.func @transform_7(%arg0: i32, %arg1: memref<32xi32, #tpu.memory_space<smem>>, %arg2: memref<2xi32, #tpu.memory_space<smem>>) -> (i32, i32, i32) {
    %c0_i32 = arith.constant 0 : i32
    %c0_i32_0 = arith.constant 0 : i32
    %c0_i32_1 = arith.constant 0 : i32
    return %arg0, %c0_i32, %c0_i32_0 : i32, i32, i32
  }
}

</mosaic_0001>

<llo_original>
// kernel: tpu_custom_call.1
$region0: #{tpu_custom_call.1}
  #allocation0 [shape = 'u32[]', space=smem, size = 0x4, offset = 0x4, fixed_abs, tag = 'smem constant byte address 0x4 - core index']
  #allocation1 [shape = 'u32[144,128]{1,0:T(1,128)}', space=vmem, size = 0x12000, scoped, tag = 'internal scratch']
  #allocation2 [shape = 'f32[16,32]{1,0:T(8,128)}', space=vmem, size = 0x2000, scoped, tag = 'scratch operand']
  #allocation3 [shape = 's32[1]{0}', space=sflag, size = 0x4, scoped, tag = 'scratch operand']
  #allocation4 [shape = 's32[1]{0}', space=sflag, size = 0x4, scoped, tag = 'scoped memory for tpu_custom_call.1']
  #allocation5 [shape = 'u8[512]{0}', space=smem, size = 0x200, scoped, tag = 'prefetched SMEM operand 0']
  #allocation6 [shape = 'u8[512]{0}', space=smem, size = 0x200, scoped, tag = 'prefetched SMEM operand 1']
  #allocation7 [shape = 's32[]', space=sflag, size = 0x4, offset = 0, fixed_abs, tag = 'sflag constant byte address 0x0 - dummy sync flag']
  #allocation8 [shape = 's32[]', space=sflag, size = 0x4, offset = 0, fixed_abs, tag = 'sflag constant byte address 0x0 - dummy sync flag']
  #allocation9 [shape = 's32[]', space=sflag, size = 0x4, offset = 0, fixed_abs, tag = 'sflag constant byte address 0x0 - dummy sync flag']
  #allocation10 [shape = 's32[]', space=sflag, size = 0x4, offset = 0, fixed_abs, tag = 'sflag constant byte address 0x0 - dummy sync flag']
  #allocation11 [shape = 's32[]', space=sflag, size = 0x4, offset = 0, fixed_abs, tag = 'sflag constant byte address 0x0 - dummy sync flag']
  #allocation12 [shape = 's32[]', space=sflag, size = 0x4, offset = 0, fixed_abs, tag = 'sflag constant byte address 0x0 - dummy sync flag']
  #allocation13 [shape = 's32[]', space=sflag, size = 0x4, offset = 0, fixed_abs, tag = 'sflag constant byte address 0x0 - dummy sync flag']
  #allocation14 [shape = 's32[]', space=sflag, size = 0x4, offset = 0, fixed_abs, tag = 'sflag constant byte address 0x0 - dummy sync flag']
  #allocation15 [shape = 's32[]', space=sflag, size = 0x4, offset = 0, fixed_abs, tag = 'sflag constant byte address 0x0 - dummy sync flag']
  #allocation16 [shape = 's32[]', space=sflag, size = 0x4, offset = 0, fixed_abs, tag = 'sflag constant byte address 0x0 - dummy sync flag']
  #allocation17 [shape = 's32[]', space=sflag, size = 0x4, offset = 0, fixed_abs, tag = 'sflag constant byte address 0x0 - dummy sync flag']
  #allocation18 [shape = 's32[]', space=sflag, size = 0x4, offset = 0, fixed_abs, tag = 'sflag constant byte address 0x0 - dummy sync flag']
  #allocation19 [shape = 's32[]', space=sflag, size = 0x4, offset = 0, fixed_abs, tag = 'sflag constant byte address 0x0 - dummy sync flag']
  #allocation20 [shape = 's32[]', space=sflag, size = 0x4, offset = 0, fixed_abs, tag = 'sflag constant byte address 0x0 - dummy sync flag']
  #allocation21 [shape = 's32[]', space=sflag, size = 0x4, offset = 0, fixed_abs, tag = 'sflag constant byte address 0x0 - dummy sync flag']
  #allocation22 [shape = 's32[]', space=sflag, size = 0x4, offset = 0, fixed_abs, tag = 'sflag constant byte address 0x0 - dummy sync flag']
  %s0 = inlined_call_operand.vmem [shape: s32[32], index: 0, kind: input, shape index: {}]
  %s1 = inlined_call_operand.vmem [shape: s32[2], index: 1, kind: input, shape index: {}]
  %s2 = inlined_call_operand.vmem [shape: f32[4,16,32], index: 2, kind: input, shape index: {}]
  %s3 = inlined_call_operand.vmem [shape: s32[4,17,1], index: 3, kind: input, shape index: {}]
  %s4 = inlined_call_operand.vmem [shape: s32[4,8,1], index: 4, kind: input, shape index: {}]
  %s5 = inlined_call_operand.vmem [shape: f32[4,8,8], index: 5, kind: input, shape index: {}]
  %s6 = inlined_call_operand.vmem [shape: f32[2,32], index: 6, kind: input, shape index: {}]
  %s7 = inlined_call_operand.vmem [shape: f32[8,32], index: 7, kind: input, shape index: {}]
  %s8 = inlined_call_operand.vmem [shape: f32[16,32], index: 8, kind: input, shape index: {}]
  %s9 = inlined_call_operand.vmem [shape: f32[4,25,32], index: 9, kind: output, shape index: {}]
  %s10 = sld [smem:[#allocation0]]
  $region608: #{tpu_custom_call.1} parent=0
    _
  %s12 = ssub.s32 1, %s10
  %s13 = scalar_select 0, %s12, %s10
  %s14 = sshll.u32 %s0, 4
  %s15 = int_to_ptr.vmem [resolvable:$true] %s14
  %17 = dma.vmem_to_smem %s15, 16, [#allocation5], [#allocation4]
  %s18 = sshll.u32 %s1, 4
  %s19 = int_to_ptr.vmem [resolvable:$true] %s18
  %21 = dma.vmem_to_smem %s19, 16, [#allocation6], [#allocation4]
  %22 = dma.done [#allocation4], 32
  %23 = sfence
  loop: start=0, step=1, limit=4
  $region2: #{tpu_custom_call.1} parent=0 // loop_pre_header
    _
  $region3: #{tpu_custom_call.1} parent=0 // loop_header
    %s25 = sphi 0, %s29
    %p26 = scmp.ge.s32.totalorder %s25, 4
    %s35 = sphi 0, %s37
    %s38 = sphi 0, %s35
    %s39 = sphi 0, %s38
    %s55 = sphi 0, %s39
    %s61 = sphi 0, %s63
    %s64 = sphi 0, %s61
    %s65 = sphi 0, %s64
    %s81 = sphi 0, %s65
    %s87 = sphi 0, %s89
    %s90 = sphi 0, %s87
    %s91 = sphi 0, %s90
    %s107 = sphi 0, %s91
    %s113 = sphi 0, %s115
    %s116 = sphi 0, %s113
    %s117 = sphi 0, %s116
    %s133 = sphi 0, %s117
    %s137 = sphi 0, %s137
    %s139 = sphi 0, %s137
    %s140 = sphi 0, %s139
    %s154 = sphi 0, %s140
    %s158 = sphi 0, %s158
    %s160 = sphi 0, %s158
    %s161 = sphi 0, %s160
    %s175 = sphi 0, %s161
    %s181 = sphi 0, %s183
    %s184 = sphi 0, %s181
    %s185 = sphi 0, %s184
    %s201 = sphi 0, %s185
  $region4: #{tpu_custom_call.1} parent=0 // loop_header_branch
    %28 = sbr.rel (%p26) target = $region8
  $region5: #{tpu_custom_call.1} parent=0 // loop_body
    %s30 = ssub.s32 %s25, 1
    %s31 = ssub.s32 %s25, 2
    %s32 = sadd.s32 %s25, 1
    %s33 = ssub.s32 %s25, %s32
    %p34 = scmp.eq.s32.totalorder %s33, 0
    %s36 = sadd.s32 %s35, 1
    %s37 = scalar_select %p34, %s35, %s36
    %p40 = pneg %p34
    %p41 = scmp.eq.s32.totalorder %s25, 1
    %p42 = por %p40, %p41
    %p43 = scmp.ne.s32.totalorder %s35, %s38
    %p44 = scmp.eq.s32.totalorder %s25, 0
    %p45 = por %p43, %p44
    %p46 = scmp.ne.s32.totalorder %s35, %s38
    %p47 = scmp.eq.s32.totalorder %s30, 1
    %p48 = por %p46, %p47
    %p49 = scmp.ne.s32.totalorder %s38, %s39
    %p50 = scmp.eq.s32.totalorder %s30, 0
    %p51 = por %p49, %p50
    %p52 = scmp.ne.s32.totalorder %s38, %s39
    %p53 = scmp.eq.s32.totalorder %s31, 1
    %p54 = por %p52, %p53
    %p56 = scmp.ne.s32.totalorder %s39, %s55
    %p57 = scmp.eq.s32.totalorder %s31, 0
    %p58 = por %p56, %p57
    %s59 = ssub.s32 %s25, %s32
    %p60 = scmp.eq.s32.totalorder %s59, 0
    %s62 = sadd.s32 %s61, 1
    %s63 = scalar_select %p60, %s61, %s62
    %p66 = pneg %p60
    %p67 = scmp.eq.s32.totalorder %s25, 1
    %p68 = por %p66, %p67
    %p69 = scmp.ne.s32.totalorder %s61, %s64
    %p70 = scmp.eq.s32.totalorder %s25, 0
    %p71 = por %p69, %p70
    %p72 = scmp.ne.s32.totalorder %s61, %s64
    %p73 = scmp.eq.s32.totalorder %s30, 1
    %p74 = por %p72, %p73
    %p75 = scmp.ne.s32.totalorder %s64, %s65
    %p76 = scmp.eq.s32.totalorder %s30, 0
    %p77 = por %p75, %p76
    %p78 = scmp.ne.s32.totalorder %s64, %s65
    %p79 = scmp.eq.s32.totalorder %s31, 1
    %p80 = por %p78, %p79
    %p82 = scmp.ne.s32.totalorder %s65, %s81
    %p83 = scmp.eq.s32.totalorder %s31, 0
    %p84 = por %p82, %p83
    %s85 = ssub.s32 %s25, %s32
    %p86 = scmp.eq.s32.totalorder %s85, 0
    %s88 = sadd.s32 %s87, 1
    %s89 = scalar_select %p86, %s87, %s88
    %p92 = pneg %p86
    %p93 = scmp.eq.s32.totalorder %s25, 1
    %p94 = por %p92, %p93
    %p95 = scmp.ne.s32.totalorder %s87, %s90
    %p96 = scmp.eq.s32.totalorder %s25, 0
    %p97 = por %p95, %p96
    %p98 = scmp.ne.s32.totalorder %s87, %s90
    %p99 = scmp.eq.s32.totalorder %s30, 1
    %p100 = por %p98, %p99
    %p101 = scmp.ne.s32.totalorder %s90, %s91
    %p102 = scmp.eq.s32.totalorder %s30, 0
    %p103 = por %p101, %p102
    %p104 = scmp.ne.s32.totalorder %s90, %s91
    %p105 = scmp.eq.s32.totalorder %s31, 1
    %p106 = por %p104, %p105
    %p108 = scmp.ne.s32.totalorder %s91, %s107
    %p109 = scmp.eq.s32.totalorder %s31, 0
    %p110 = por %p108, %p109
    %s111 = ssub.s32 %s25, %s32
    %p112 = scmp.eq.s32.totalorder %s111, 0
    %s114 = sadd.s32 %s113, 1
    %s115 = scalar_select %p112, %s113, %s114
    %p118 = pneg %p112
    %p119 = scmp.eq.s32.totalorder %s25, 1
    %p120 = por %p118, %p119
    %p121 = scmp.ne.s32.totalorder %s113, %s116
    %p122 = scmp.eq.s32.totalorder %s25, 0
    %p123 = por %p121, %p122
    %p124 = scmp.ne.s32.totalorder %s113, %s116
    %p125 = scmp.eq.s32.totalorder %s30, 1
    %p126 = por %p124, %p125
    %p127 = scmp.ne.s32.totalorder %s116, %s117
    %p128 = scmp.eq.s32.totalorder %s30, 0
    %p129 = por %p127, %p128
    %p130 = scmp.ne.s32.totalorder %s116, %s117
    %p131 = scmp.eq.s32.totalorder %s31, 1
    %p132 = por %p130, %p131
    %p134 = scmp.ne.s32.totalorder %s117, %s133
    %p135 = scmp.eq.s32.totalorder %s31, 0
    %p136 = por %p134, %p135
    %s138 = sadd.s32 %s137, 1
    %p141 = scmp.eq.s32.totalorder %s25, 1
    %p142 = scmp.ne.s32.totalorder %s137, %s139
    %p143 = scmp.eq.s32.totalorder %s25, 0
    %p144 = por %p142, %p143
    %p145 = scmp.ne.s32.totalorder %s137, %s139
    %p146 = scmp.eq.s32.totalorder %s30, 1
    %p147 = por %p145, %p146
    %p148 = scmp.ne.s32.totalorder %s139, %s140
    %p149 = scmp.eq.s32.totalorder %s30, 0
    %p150 = por %p148, %p149
    %p151 = scmp.ne.s32.totalorder %s139, %s140
    %p152 = scmp.eq.s32.totalorder %s31, 1
    %p153 = por %p151, %p152
    %p155 = scmp.ne.s32.totalorder %s140, %s154
    %p156 = scmp.eq.s32.totalorder %s31, 0
    %p157 = por %p155, %p156
    %s159 = sadd.s32 %s158, 1
    %p162 = scmp.eq.s32.totalorder %s25, 1
    %p163 = scmp.ne.s32.totalorder %s158, %s160
    %p164 = scmp.eq.s32.totalorder %s25, 0
    %p165 = por %p163, %p164
    %p166 = scmp.ne.s32.totalorder %s158, %s160
    %p167 = scmp.eq.s32.totalorder %s30, 1
    %p168 = por %p166, %p167
    %p169 = scmp.ne.s32.totalorder %s160, %s161
    %p170 = scmp.eq.s32.totalorder %s30, 0
    %p171 = por %p169, %p170
    %p172 = scmp.ne.s32.totalorder %s160, %s161
    %p173 = scmp.eq.s32.totalorder %s31, 1
    %p174 = por %p172, %p173
    %p176 = scmp.ne.s32.totalorder %s161, %s175
    %p177 = scmp.eq.s32.totalorder %s31, 0
    %p178 = por %p176, %p177
    %s179 = ssub.s32 %s25, %s32
    %p180 = scmp.eq.s32.totalorder %s179, 0
    %s182 = sadd.s32 %s181, 1
    %s183 = scalar_select %p180, %s181, %s182
    %p186 = pneg %p180
    %p187 = scmp.eq.s32.totalorder %s25, 1
    %p188 = por %p186, %p187
    %p189 = scmp.ne.s32.totalorder %s181, %s184
    %p190 = scmp.eq.s32.totalorder %s25, 0
    %p191 = por %p189, %p190
    %p192 = scmp.ne.s32.totalorder %s181, %s184
    %p193 = scmp.eq.s32.totalorder %s30, 1
    %p194 = por %p192, %p193
    %p195 = scmp.ne.s32.totalorder %s184, %s185
    %p196 = scmp.eq.s32.totalorder %s30, 0
    %p197 = por %p195, %p196
    %p198 = scmp.ne.s32.totalorder %s184, %s185
    %p199 = scmp.eq.s32.totalorder %s31, 1
    %p200 = por %p198, %p199
    %p202 = scmp.ne.s32.totalorder %s185, %s201
    %p203 = scmp.eq.s32.totalorder %s31, 0
    %p204 = por %p202, %p203
    %p205 = scmp.le.s32.totalorder 1, %s25
    %p206 = scmp.lt.s32.totalorder %s25, 3
    %p207 = pnand %p205, %p206
    %p208 = pneg %p207
    // Predicated region
    $region9: #{tpu_custom_call.1} parent=5 // pred_check
      _
    $region10: #{tpu_custom_call.1} parent=5 // pred_check_branch
      %210 = sbr.rel (%p207) target = $region12
    $region11: #{tpu_custom_call.1} parent=5 // pred_region
      %s211 = ssub.s32 %s25, 1
      // Predicated region
      $region13: #{tpu_custom_call.1} parent=11 // pred_check
        %p212 = pneg %p150
      $region14: #{tpu_custom_call.1} parent=11 // pred_check_branch
        %214 = sbr.rel (%p212) target = $region16
      $region15: #{tpu_custom_call.1} parent=11 // pred_region
        _
      $region16: #{tpu_custom_call.1} parent=11 // pred_fallthru
        _
      // Predicated region
      $region17: #{tpu_custom_call.1} parent=11 // pred_check
        %p215 = pneg %p171
      $region18: #{tpu_custom_call.1} parent=11 // pred_check_branch
        %217 = sbr.rel (%p215) target = $region20
      $region19: #{tpu_custom_call.1} parent=11 // pred_region
        _
      $region20: #{tpu_custom_call.1} parent=11 // pred_fallthru
        _
    $region12: #{tpu_custom_call.1} parent=5 // pred_fallthru
      _
    %p218 = scmp.lt.s32.totalorder %s25, 2
    // Predicated region
    $region21: #{tpu_custom_call.1} parent=5 // pred_check
      %p219 = pneg %p218
    $region22: #{tpu_custom_call.1} parent=5 // pred_check_branch
      %221 = sbr.rel (%p219) target = $region24
    $region23: #{tpu_custom_call.1} parent=5 // pred_region
      // Predicated region
      $region25: #{tpu_custom_call.1} parent=23 // pred_check
        %p222 = pneg %p45
      $region26: #{tpu_custom_call.1} parent=23 // pred_check_branch
        %224 = sbr.rel (%p222) target = $region28
      $region27: #{tpu_custom_call.1} parent=23 // pred_region
        %s225 = smul.u32 2, %s25
        %p226 = scmp.lt.s32.totalorder %s225, 3
        %s227 = scalar_select %p226, %s225, 3
        %s228 = smul.addr %s227, 2
        %s229 = smul.addr %s228, 8
        %s230 = scalar_lea.vmem %s2, %s229
        %s231 = smul.u32 2, %s25
      $region28: #{tpu_custom_call.1} parent=23 // pred_fallthru
        _
      // Predicated region
      $region29: #{tpu_custom_call.1} parent=23 // pred_check
        %p232 = pneg %p71
      $region30: #{tpu_custom_call.1} parent=23 // pred_check_branch
        %234 = sbr.rel (%p232) target = $region32
      $region31: #{tpu_custom_call.1} parent=23 // pred_region
        %s235 = smul.u32 2, %s25
        %p236 = scmp.lt.s32.totalorder %s235, 3
        %s237 = scalar_select %p236, %s235, 3
        %s238 = smul.addr %s237, 3
        %s239 = smul.addr %s238, 8
        %s240 = scalar_lea.vmem %s3, %s239
        %s241 = smul.u32 2, %s25
      $region32: #{tpu_custom_call.1} parent=23 // pred_fallthru
        _
      // Predicated region
      $region33: #{tpu_custom_call.1} parent=23 // pred_check
        %p242 = pneg %p97
      $region34: #{tpu_custom_call.1} parent=23 // pred_check_branch
        %244 = sbr.rel (%p242) target = $region36
      $region35: #{tpu_custom_call.1} parent=23 // pred_region
        %s245 = smul.u32 2, %s25
        %p246 = scmp.lt.s32.totalorder %s245, 3
        %s247 = scalar_select %p246, %s245, 3
        %s248 = smul.addr %s247, 8
        %s249 = scalar_lea.vmem %s4, %s248
        %s250 = smul.u32 2, %s25
      $region36: #{tpu_custom_call.1} parent=23 // pred_fallthru
        _
      // Predicated region
      $region37: #{tpu_custom_call.1} parent=23 // pred_check
        %p251 = pneg %p123
      $region38: #{tpu_custom_call.1} parent=23 // pred_check_branch
        %253 = sbr.rel (%p251) target = $region40
      $region39: #{tpu_custom_call.1} parent=23 // pred_region
        %s254 = smul.u32 2, %s25
        %p255 = scmp.lt.s32.totalorder %s254, 3
        %s256 = scalar_select %p255, %s254, 3
        %s257 = smul.addr %s256, 8
        %s258 = scalar_lea.vmem %s5, %s257
        %s259 = smul.u32 2, %s25
      $region40: #{tpu_custom_call.1} parent=23 // pred_fallthru
        _
    $region24: #{tpu_custom_call.1} parent=5 // pred_fallthru
      _
    %p260 = scmp.le.s32.totalorder 1, %s25
    %p261 = scmp.lt.s32.totalorder %s25, 3
    %p262 = pnand %p260, %p261
    %p263 = pneg %p262
    // Predicated region
    $region41: #{tpu_custom_call.1} parent=5 // pred_check
      _
    $region42: #{tpu_custom_call.1} parent=5 // pred_check_branch
      %265 = sbr.rel (%p262) target = $region44
    $region43: #{tpu_custom_call.1} parent=5 // pred_region
      %s266 = ssub.s32 %s25, 1
      %s267 = smul.u32 2, %s30
      %p268 = scmp.lt.s32.totalorder %s267, 3
      %s269 = scalar_select %p268, %s267, 3
      %s270 = smul.addr %s269, 2
      %s271 = smul.addr %s270, 8
      %s272 = scalar_lea.vmem %s2, %s271
      %p273 = pneg %p51
      %p274 = pneg %p48
      %s275 = smul.u32 2, %s30
      %p276 = scmp.lt.s32.totalorder %s275, 3
      %s277 = scalar_select %p276, %s275, 3
      %s278 = smul.addr %s277, 3
      %s279 = smul.addr %s278, 8
      %s280 = scalar_lea.vmem %s3, %s279
      %p281 = pneg %p77
      %p282 = pneg %p74
      %s283 = smul.u32 2, %s30
      %p284 = scmp.lt.s32.totalorder %s283, 3
      %s285 = scalar_select %p284, %s283, 3
      %s286 = smul.addr %s285, 8
      %s287 = scalar_lea.vmem %s4, %s286
      %p288 = pneg %p103
      %p289 = pneg %p100
      %s290 = smul.u32 2, %s30
      %p291 = scmp.lt.s32.totalorder %s290, 3
      %s292 = scalar_select %p291, %s290, 3
      %s293 = smul.addr %s292, 8
      %s294 = scalar_lea.vmem %s5, %s293
      %p295 = pneg %p129
      %p296 = pneg %p126
      %p297 = pneg %p150
      %p298 = pneg %p147
      %p299 = pneg %p171
      %p300 = pneg %p168
      %p301 = pneg %p197
      %p302 = pneg %p194
      %s303 = smul.u32 2, %s30
      %p304 = scmp.lt.s32.totalorder %s303, 3
      %s305 = scalar_select %p304, %s303, 3
      %s306 = smul.addr %s305, 4
      %s307 = smul.addr %s306, 8
      %s308 = scalar_lea.vmem %s9, %s307
      %s309 = smul.u32 2, %s30
      %p310 = scmp.lt.s32.totalorder %s309, 3
      %s311 = scalar_select %p310, %s309, 3
      %s312 = smul.addr %s311, 2
      %s313 = smul.addr %s312, 8
      %s314 = scalar_lea.vmem %s2, %s313
      %s315 = smul.u32 2, %s30
      %s316 = smul.u32 2, %s30
      %p317 = scmp.lt.s32.totalorder %s316, 3
      %s318 = scalar_select %p317, %s316, 3
      %s319 = smul.addr %s318, 3
      %s320 = smul.addr %s319, 8
      %s321 = scalar_lea.vmem %s3, %s320
      %s322 = smul.u32 2, %s30
      %s323 = smul.u32 2, %s30
      %p324 = scmp.lt.s32.totalorder %s323, 3
      %s325 = scalar_select %p324, %s323, 3
      %s326 = smul.addr %s325, 8
      %s327 = scalar_lea.vmem %s4, %s326
      %s328 = smul.u32 2, %s30
      %s329 = smul.u32 2, %s30
      %p330 = scmp.lt.s32.totalorder %s329, 3
      %s331 = scalar_select %p330, %s329, 3
      %s332 = smul.addr %s331, 8
      %s333 = scalar_lea.vmem %s5, %s332
      %s334 = smul.u32 2, %s30
      %s335 = smul.u32 2, %s30
      %p336 = scmp.lt.s32.totalorder %s335, 3
      %s337 = scalar_select %p336, %s335, 3
      %s338 = smul.addr %s337, 4
      %s339 = smul.addr %s338, 8
      %s340 = scalar_lea.vmem %s9, %s339
      %s341 = smul.u32 2, %s30
      %s342 = smul.u32 %s30, 16
      %s343 = sld [smem:[#allocation5 + %s342]]
      %s344 = sadd.s32 %s342, 1
      %s345 = sld [smem:[#allocation5 + %s344]]
      %s346 = sadd.s32 %s342, 2
      %s347 = sld [smem:[#allocation5 + %s346]]
      %s348 = sadd.s32 %s342, 3
      %s349 = sld [smem:[#allocation5 + %s348]]
      %s350 = sadd.s32 %s342, 4
      %s351 = sld [smem:[#allocation5 + %s350]]
      %s352 = sadd.s32 %s342, 5
      %s353 = sld [smem:[#allocation5 + %s352]]
      %s354 = sadd.s32 %s342, 6
      %s355 = sld [smem:[#allocation5 + %s354]]
      %s356 = sadd.s32 %s342, 7
      %s357 = sld [smem:[#allocation5 + %s356]]
      %s358 = sadd.s32 %s342, 8
      %s359 = sld [smem:[#allocation5 + %s358]]
      %s360 = sadd.s32 %s342, 9
      %s361 = sld [smem:[#allocation5 + %s360]]
      %s362 = sadd.s32 %s342, 10
      %s363 = sld [smem:[#allocation5 + %s362]]
      %s364 = sadd.s32 %s342, 11
      %s365 = sld [smem:[#allocation5 + %s364]]
      %s366 = sadd.s32 %s342, 12
      %s367 = sld [smem:[#allocation5 + %s366]]
      %s368 = sadd.s32 %s342, 13
      %s369 = sld [smem:[#allocation5 + %s368]]
      %s370 = sadd.s32 %s342, 14
      %s371 = sld [smem:[#allocation5 + %s370]]
      %s372 = sadd.s32 %s342, 15
      %s373 = sld [smem:[#allocation5 + %s372]]
      %s374 = sld [smem:[#allocation6 + %s30]]
      %p375 = scmp.ge.s32.totalorder %s343, 0
      // Predicated region
      $region45: #{tpu_custom_call.1} parent=43 // pred_check
        %p376 = pneg %p375
      $region46: #{tpu_custom_call.1} parent=43 // pred_check_branch
        %378 = sbr.rel (%p376) target = $region48
      $region47: #{tpu_custom_call.1} parent=43 // pred_region
        %s379 = scalar_lea.vmem %s8, %s343
        %p381 = scmp.lt.u32.totalorder 1, 8
        %p382 = pneg %p381
        // Predicated region
        $region49: #{tpu_custom_call.1} parent=47 // pred_check
          _
        $region50: #{tpu_custom_call.1} parent=47 // pred_check_branch
          %384 = sbr.rel (%p381) target = $region52
        $region51: #{tpu_custom_call.1} parent=47 // pred_region
          %s399 = sand.u32 1, 7
          %p400 = scmp.eq.s32.totalorder %s399, 0
          %p401 = pneg %p400
          // Predicated region
          $region64: #{tpu_custom_call.1} parent=51 // pred_check
            _
          $region65: #{tpu_custom_call.1} parent=51 // pred_check_branch
            %403 = sbr.rel (%p400) target = $region67
          $region66: #{tpu_custom_call.1} parent=51 // pred_region
            %s404 = sand.u32 1, 7
            %s405 = ssub.s32 1, %s404
            %s406 = scalar_lea.vmem %s379, %s405
            %s407 = ssub.s32 1, %s404
            %s408 = scalar_lea.vmem [#allocation2], %s407
            %s409 = sshllo.u32 0, %s404
            loop: start=0, step=1, limit=1
            $region68: #{tpu_custom_call.1} parent=66 // loop_pre_header
              _
            $region69: #{tpu_custom_call.1} parent=66 // loop_header
              %s411 = sphi 0, %s415
              %p412 = scmp.ge.s32.totalorder %s411, 1
              %s416 = sphi %s406, %s406
              %s417 = sphi %s408, %s408
            $region70: #{tpu_custom_call.1} parent=66 // loop_header_branch
              %414 = sbr.rel (%p412) target = $region74
            $region71: #{tpu_custom_call.1} parent=66 // loop_body
              %v418 = vld [vmem:[%s416] sm:%s409]
              %419 = vst [vmem:[%s417] sm:%s409] %v418
            $region72: #{tpu_custom_call.1} parent=66 // loop_footer
              %s415 = sadd.s32 1, %s411
            $region73: #{tpu_custom_call.1} parent=66 // loop_footer_branch
              %410 = sbr.rel target = $region69
            $region74: #{tpu_custom_call.1} parent=66 // loop_exit
              _
          $region67: #{tpu_custom_call.1} parent=51 // pred_fallthru
            _
        $region52: #{tpu_custom_call.1} parent=47 // pred_fallthru
          _
        // Predicated region
        $region53: #{tpu_custom_call.1} parent=47 // pred_check
          %p385 = pneg %p381
        $region54: #{tpu_custom_call.1} parent=47 // pred_check_branch
          %387 = sbr.rel (%p385) target = $region56
        $region55: #{tpu_custom_call.1} parent=47 // pred_region
          %s388 = sshllo.u32 0, 1
          loop: start=0, step=1, limit=1
          $region57: #{tpu_custom_call.1} parent=55 // loop_pre_header
            _
          $region58: #{tpu_custom_call.1} parent=55 // loop_header
            %s390 = sphi 0, %s394
            %p391 = scmp.ge.s32.totalorder %s390, 1
            %s395 = sphi %s379, %s379
            %s396 = sphi [#allocation2], [#allocation2]
          $region59: #{tpu_custom_call.1} parent=55 // loop_header_branch
            %393 = sbr.rel (%p391) target = $region63
          $region60: #{tpu_custom_call.1} parent=55 // loop_body
            %v397 = vld [vmem:[%s395] sm:%s388]
            %398 = vst [vmem:[%s396] sm:%s388] %v397
          $region61: #{tpu_custom_call.1} parent=55 // loop_footer
            %s394 = sadd.s32 1, %s390
          $region62: #{tpu_custom_call.1} parent=55 // loop_footer_branch
            %389 = sbr.rel target = $region58
          $region63: #{tpu_custom_call.1} parent=55 // loop_exit
            _
        $region56: #{tpu_custom_call.1} parent=47 // pred_fallthru
          _
        // Predicated region
        $region75: #{tpu_custom_call.1} parent=47 // pred_check
          _
        $region76: #{tpu_custom_call.1} parent=47 // pred_check_branch
          %422 = sbr.rel (0) target = $region78
        $region77: #{tpu_custom_call.1} parent=47 // pred_region
          %423 = vsyncadd [#allocation3], 16
        $region78: #{tpu_custom_call.1} parent=47 // pred_fallthru
          _
      $region48: #{tpu_custom_call.1} parent=43 // pred_fallthru
        _
      %p424 = scmp.ge.s32.totalorder %s345, 0
      // Predicated region
      $region79: #{tpu_custom_call.1} parent=43 // pred_check
        %p425 = pneg %p424
      $region80: #{tpu_custom_call.1} parent=43 // pred_check_branch
        %427 = sbr.rel (%p425) target = $region82
      $region81: #{tpu_custom_call.1} parent=43 // pred_region
        %s428 = scalar_lea.vmem %s8, %s345
        %s429 = scalar_lea.vmem [#allocation2], 1
        %p431 = scmp.lt.u32.totalorder 1, 8
        %p432 = pneg %p431
        // Predicated region
        $region83: #{tpu_custom_call.1} parent=81 // pred_check
          _
        $region84: #{tpu_custom_call.1} parent=81 // pred_check_branch
          %434 = sbr.rel (%p431) target = $region86
        $region85: #{tpu_custom_call.1} parent=81 // pred_region
          %s449 = sand.u32 1, 7
          %p450 = scmp.eq.s32.totalorder %s449, 0
          %p451 = pneg %p450
          // Predicated region
          $region98: #{tpu_custom_call.1} parent=85 // pred_check
            _
          $region99: #{tpu_custom_call.1} parent=85 // pred_check_branch
            %453 = sbr.rel (%p450) target = $region101
          $region100: #{tpu_custom_call.1} parent=85 // pred_region
            %s454 = sand.u32 1, 7
            %s455 = ssub.s32 1, %s454
            %s456 = scalar_lea.vmem %s428, %s455
            %s457 = ssub.s32 1, %s454
            %s458 = scalar_lea.vmem %s429, %s457 [#allocation2]
            %s459 = sshllo.u32 0, %s454
            loop: start=0, step=1, limit=1
            $region102: #{tpu_custom_call.1} parent=100 // loop_pre_header
              _
            $region103: #{tpu_custom_call.1} parent=100 // loop_header
              %s461 = sphi 0, %s465
              %p462 = scmp.ge.s32.totalorder %s461, 1
              %s466 = sphi %s456, %s456
              %s467 = sphi %s458, %s458
            $region104: #{tpu_custom_call.1} parent=100 // loop_header_branch
              %464 = sbr.rel (%p462) target = $region108
            $region105: #{tpu_custom_call.1} parent=100 // loop_body
              %v468 = vld [vmem:[%s466] sm:%s459]
              %469 = vst [vmem:[%s467] sm:%s459] %v468
            $region106: #{tpu_custom_call.1} parent=100 // loop_footer
              %s465 = sadd.s32 1, %s461
            $region107: #{tpu_custom_call.1} parent=100 // loop_footer_branch
              %460 = sbr.rel target = $region103
            $region108: #{tpu_custom_call.1} parent=100 // loop_exit
              _
          $region101: #{tpu_custom_call.1} parent=85 // pred_fallthru
            _
        $region86: #{tpu_custom_call.1} parent=81 // pred_fallthru
          _
        // Predicated region
        $region87: #{tpu_custom_call.1} parent=81 // pred_check
          %p435 = pneg %p431
        $region88: #{tpu_custom_call.1} parent=81 // pred_check_branch
          %437 = sbr.rel (%p435) target = $region90
        $region89: #{tpu_custom_call.1} parent=81 // pred_region
          %s438 = sshllo.u32 0, 1
          loop: start=0, step=1, limit=1
          $region91: #{tpu_custom_call.1} parent=89 // loop_pre_header
            _
          $region92: #{tpu_custom_call.1} parent=89 // loop_header
            %s440 = sphi 0, %s444
            %p441 = scmp.ge.s32.totalorder %s440, 1
            %s445 = sphi %s428, %s428
            %s446 = sphi %s429, %s429
          $region93: #{tpu_custom_call.1} parent=89 // loop_header_branch
            %443 = sbr.rel (%p441) target = $region97
          $region94: #{tpu_custom_call.1} parent=89 // loop_body
            %v447 = vld [vmem:[%s445] sm:%s438]
            %448 = vst [vmem:[%s446] sm:%s438] %v447
          $region95: #{tpu_custom_call.1} parent=89 // loop_footer
            %s444 = sadd.s32 1, %s440
          $region96: #{tpu_custom_call.1} parent=89 // loop_footer_branch
            %439 = sbr.rel target = $region92
          $region97: #{tpu_custom_call.1} parent=89 // loop_exit
            _
        $region90: #{tpu_custom_call.1} parent=81 // pred_fallthru
          _
        // Predicated region
        $region109: #{tpu_custom_call.1} parent=81 // pred_check
          _
        $region110: #{tpu_custom_call.1} parent=81 // pred_check_branch
          %472 = sbr.rel (0) target = $region112
        $region111: #{tpu_custom_call.1} parent=81 // pred_region
          %473 = vsyncadd [#allocation3], 16
        $region112: #{tpu_custom_call.1} parent=81 // pred_fallthru
          _
      $region82: #{tpu_custom_call.1} parent=43 // pred_fallthru
        _
      %p474 = scmp.ge.s32.totalorder %s347, 0
      // Predicated region
      $region113: #{tpu_custom_call.1} parent=43 // pred_check
        %p475 = pneg %p474
      $region114: #{tpu_custom_call.1} parent=43 // pred_check_branch
        %477 = sbr.rel (%p475) target = $region116
      $region115: #{tpu_custom_call.1} parent=43 // pred_region
        %s478 = scalar_lea.vmem %s8, %s347
        %s479 = scalar_lea.vmem [#allocation2], 2
        %p481 = scmp.lt.u32.totalorder 1, 8
        %p482 = pneg %p481
        // Predicated region
        $region117: #{tpu_custom_call.1} parent=115 // pred_check
          _
        $region118: #{tpu_custom_call.1} parent=115 // pred_check_branch
          %484 = sbr.rel (%p481) target = $region120
        $region119: #{tpu_custom_call.1} parent=115 // pred_region
          %s499 = sand.u32 1, 7
          %p500 = scmp.eq.s32.totalorder %s499, 0
          %p501 = pneg %p500
          // Predicated region
          $region132: #{tpu_custom_call.1} parent=119 // pred_check
            _
          $region133: #{tpu_custom_call.1} parent=119 // pred_check_branch
            %503 = sbr.rel (%p500) target = $region135
          $region134: #{tpu_custom_call.1} parent=119 // pred_region
            %s504 = sand.u32 1, 7
            %s505 = ssub.s32 1, %s504
            %s506 = scalar_lea.vmem %s478, %s505
            %s507 = ssub.s32 1, %s504
            %s508 = scalar_lea.vmem %s479, %s507 [#allocation2]
            %s509 = sshllo.u32 0, %s504
            loop: start=0, step=1, limit=1
            $region136: #{tpu_custom_call.1} parent=134 // loop_pre_header
              _
            $region137: #{tpu_custom_call.1} parent=134 // loop_header
              %s511 = sphi 0, %s515
              %p512 = scmp.ge.s32.totalorder %s511, 1
              %s516 = sphi %s506, %s506
              %s517 = sphi %s508, %s508
            $region138: #{tpu_custom_call.1} parent=134 // loop_header_branch
              %514 = sbr.rel (%p512) target = $region142
            $region139: #{tpu_custom_call.1} parent=134 // loop_body
              %v518 = vld [vmem:[%s516] sm:%s509]
              %519 = vst [vmem:[%s517] sm:%s509] %v518
            $region140: #{tpu_custom_call.1} parent=134 // loop_footer
              %s515 = sadd.s32 1, %s511
            $region141: #{tpu_custom_call.1} parent=134 // loop_footer_branch
              %510 = sbr.rel target = $region137
            $region142: #{tpu_custom_call.1} parent=134 // loop_exit
              _
          $region135: #{tpu_custom_call.1} parent=119 // pred_fallthru
            _
        $region120: #{tpu_custom_call.1} parent=115 // pred_fallthru
          _
        // Predicated region
        $region121: #{tpu_custom_call.1} parent=115 // pred_check
          %p485 = pneg %p481
        $region122: #{tpu_custom_call.1} parent=115 // pred_check_branch
          %487 = sbr.rel (%p485) target = $region124
        $region123: #{tpu_custom_call.1} parent=115 // pred_region
          %s488 = sshllo.u32 0, 1
          loop: start=0, step=1, limit=1
          $region125: #{tpu_custom_call.1} parent=123 // loop_pre_header
            _
          $region126: #{tpu_custom_call.1} parent=123 // loop_header
            %s490 = sphi 0, %s494
            %p491 = scmp.ge.s32.totalorder %s490, 1
            %s495 = sphi %s478, %s478
            %s496 = sphi %s479, %s479
          $region127: #{tpu_custom_call.1} parent=123 // loop_header_branch
            %493 = sbr.rel (%p491) target = $region131
          $region128: #{tpu_custom_call.1} parent=123 // loop_body
            %v497 = vld [vmem:[%s495] sm:%s488]
            %498 = vst [vmem:[%s496] sm:%s488] %v497
          $region129: #{tpu_custom_call.1} parent=123 // loop_footer
            %s494 = sadd.s32 1, %s490
          $region130: #{tpu_custom_call.1} parent=123 // loop_footer_branch
            %489 = sbr.rel target = $region126
          $region131: #{tpu_custom_call.1} parent=123 // loop_exit
            _
        $region124: #{tpu_custom_call.1} parent=115 // pred_fallthru
          _
        // Predicated region
        $region143: #{tpu_custom_call.1} parent=115 // pred_check
          _
        $region144: #{tpu_custom_call.1} parent=115 // pred_check_branch
          %522 = sbr.rel (0) target = $region146
        $region145: #{tpu_custom_call.1} parent=115 // pred_region
          %523 = vsyncadd [#allocation3], 16
        $region146: #{tpu_custom_call.1} parent=115 // pred_fallthru
          _
      $region116: #{tpu_custom_call.1} parent=43 // pred_fallthru
        _
      %p524 = scmp.ge.s32.totalorder %s349, 0
      // Predicated region
      $region147: #{tpu_custom_call.1} parent=43 // pred_check
        %p525 = pneg %p524
      $region148: #{tpu_custom_call.1} parent=43 // pred_check_branch
        %527 = sbr.rel (%p525) target = $region150
      $region149: #{tpu_custom_call.1} parent=43 // pred_region
        %s528 = scalar_lea.vmem %s8, %s349
        %s529 = scalar_lea.vmem [#allocation2], 3
        %p531 = scmp.lt.u32.totalorder 1, 8
        %p532 = pneg %p531
        // Predicated region
        $region151: #{tpu_custom_call.1} parent=149 // pred_check
          _
        $region152: #{tpu_custom_call.1} parent=149 // pred_check_branch
          %534 = sbr.rel (%p531) target = $region154
        $region153: #{tpu_custom_call.1} parent=149 // pred_region
          %s549 = sand.u32 1, 7
          %p550 = scmp.eq.s32.totalorder %s549, 0
          %p551 = pneg %p550
          // Predicated region
          $region166: #{tpu_custom_call.1} parent=153 // pred_check
            _
          $region167: #{tpu_custom_call.1} parent=153 // pred_check_branch
            %553 = sbr.rel (%p550) target = $region169
          $region168: #{tpu_custom_call.1} parent=153 // pred_region
            %s554 = sand.u32 1, 7
            %s555 = ssub.s32 1, %s554
            %s556 = scalar_lea.vmem %s528, %s555
            %s557 = ssub.s32 1, %s554
            %s558 = scalar_lea.vmem %s529, %s557 [#allocation2]
            %s559 = sshllo.u32 0, %s554
            loop: start=0, step=1, limit=1
            $region170: #{tpu_custom_call.1} parent=168 // loop_pre_header
              _
            $region171: #{tpu_custom_call.1} parent=168 // loop_header
              %s561 = sphi 0, %s565
              %p562 = scmp.ge.s32.totalorder %s561, 1
              %s566 = sphi %s556, %s556
              %s567 = sphi %s558, %s558
            $region172: #{tpu_custom_call.1} parent=168 // loop_header_branch
              %564 = sbr.rel (%p562) target = $region176
            $region173: #{tpu_custom_call.1} parent=168 // loop_body
              %v568 = vld [vmem:[%s566] sm:%s559]
              %569 = vst [vmem:[%s567] sm:%s559] %v568
            $region174: #{tpu_custom_call.1} parent=168 // loop_footer
              %s565 = sadd.s32 1, %s561
            $region175: #{tpu_custom_call.1} parent=168 // loop_footer_branch
              %560 = sbr.rel target = $region171
            $region176: #{tpu_custom_call.1} parent=168 // loop_exit
              _
          $region169: #{tpu_custom_call.1} parent=153 // pred_fallthru
            _
        $region154: #{tpu_custom_call.1} parent=149 // pred_fallthru
          _
        // Predicated region
        $region155: #{tpu_custom_call.1} parent=149 // pred_check
          %p535 = pneg %p531
        $region156: #{tpu_custom_call.1} parent=149 // pred_check_branch
          %537 = sbr.rel (%p535) target = $region158
        $region157: #{tpu_custom_call.1} parent=149 // pred_region
          %s538 = sshllo.u32 0, 1
          loop: start=0, step=1, limit=1
          $region159: #{tpu_custom_call.1} parent=157 // loop_pre_header
            _
          $region160: #{tpu_custom_call.1} parent=157 // loop_header
            %s540 = sphi 0, %s544
            %p541 = scmp.ge.s32.totalorder %s540, 1
            %s545 = sphi %s528, %s528
            %s546 = sphi %s529, %s529
          $region161: #{tpu_custom_call.1} parent=157 // loop_header_branch
            %543 = sbr.rel (%p541) target = $region165
          $region162: #{tpu_custom_call.1} parent=157 // loop_body
            %v547 = vld [vmem:[%s545] sm:%s538]
            %548 = vst [vmem:[%s546] sm:%s538] %v547
          $region163: #{tpu_custom_call.1} parent=157 // loop_footer
            %s544 = sadd.s32 1, %s540
          $region164: #{tpu_custom_call.1} parent=157 // loop_footer_branch
            %539 = sbr.rel target = $region160
          $region165: #{tpu_custom_call.1} parent=157 // loop_exit
            _
        $region158: #{tpu_custom_call.1} parent=149 // pred_fallthru
          _
        // Predicated region
        $region177: #{tpu_custom_call.1} parent=149 // pred_check
          _
        $region178: #{tpu_custom_call.1} parent=149 // pred_check_branch
          %572 = sbr.rel (0) target = $region180
        $region179: #{tpu_custom_call.1} parent=149 // pred_region
          %573 = vsyncadd [#allocation3], 16
        $region180: #{tpu_custom_call.1} parent=149 // pred_fallthru
          _
      $region150: #{tpu_custom_call.1} parent=43 // pred_fallthru
        _
      %p574 = scmp.ge.s32.totalorder %s351, 0
      // Predicated region
      $region181: #{tpu_custom_call.1} parent=43 // pred_check
        %p575 = pneg %p574
      $region182: #{tpu_custom_call.1} parent=43 // pred_check_branch
        %577 = sbr.rel (%p575) target = $region184
      $region183: #{tpu_custom_call.1} parent=43 // pred_region
        %s578 = scalar_lea.vmem %s8, %s351
        %s579 = scalar_lea.vmem [#allocation2], 4
        %p581 = scmp.lt.u32.totalorder 1, 8
        %p582 = pneg %p581
        // Predicated region
        $region185: #{tpu_custom_call.1} parent=183 // pred_check
          _
        $region186: #{tpu_custom_call.1} parent=183 // pred_check_branch
          %584 = sbr.rel (%p581) target = $region188
        $region187: #{tpu_custom_call.1} parent=183 // pred_region
          %s599 = sand.u32 1, 7
          %p600 = scmp.eq.s32.totalorder %s599, 0
          %p601 = pneg %p600
          // Predicated region
          $region200: #{tpu_custom_call.1} parent=187 // pred_check
            _
          $region201: #{tpu_custom_call.1} parent=187 // pred_check_branch
            %603 = sbr.rel (%p600) target = $region203
          $region202: #{tpu_custom_call.1} parent=187 // pred_region
            %s604 = sand.u32 1, 7
            %s605 = ssub.s32 1, %s604
            %s606 = scalar_lea.vmem %s578, %s605
            %s607 = ssub.s32 1, %s604
            %s608 = scalar_lea.vmem %s579, %s607 [#allocation2]
            %s609 = sshllo.u32 0, %s604
            loop: start=0, step=1, limit=1
            $region204: #{tpu_custom_call.1} parent=202 // loop_pre_header
              _
            $region205: #{tpu_custom_call.1} parent=202 // loop_header
              %s611 = sphi 0, %s615
              %p612 = scmp.ge.s32.totalorder %s611, 1
              %s616 = sphi %s606, %s606
              %s617 = sphi %s608, %s608
            $region206: #{tpu_custom_call.1} parent=202 // loop_header_branch
              %614 = sbr.rel (%p612) target = $region210
            $region207: #{tpu_custom_call.1} parent=202 // loop_body
              %v618 = vld [vmem:[%s616] sm:%s609]
              %619 = vst [vmem:[%s617] sm:%s609] %v618
            $region208: #{tpu_custom_call.1} parent=202 // loop_footer
              %s615 = sadd.s32 1, %s611
            $region209: #{tpu_custom_call.1} parent=202 // loop_footer_branch
              %610 = sbr.rel target = $region205
            $region210: #{tpu_custom_call.1} parent=202 // loop_exit
              _
          $region203: #{tpu_custom_call.1} parent=187 // pred_fallthru
            _
        $region188: #{tpu_custom_call.1} parent=183 // pred_fallthru
          _
        // Predicated region
        $region189: #{tpu_custom_call.1} parent=183 // pred_check
          %p585 = pneg %p581
        $region190: #{tpu_custom_call.1} parent=183 // pred_check_branch
          %587 = sbr.rel (%p585) target = $region192
        $region191: #{tpu_custom_call.1} parent=183 // pred_region
          %s588 = sshllo.u32 0, 1
          loop: start=0, step=1, limit=1
          $region193: #{tpu_custom_call.1} parent=191 // loop_pre_header
            _
          $region194: #{tpu_custom_call.1} parent=191 // loop_header
            %s590 = sphi 0, %s594
            %p591 = scmp.ge.s32.totalorder %s590, 1
            %s595 = sphi %s578, %s578
            %s596 = sphi %s579, %s579
          $region195: #{tpu_custom_call.1} parent=191 // loop_header_branch
            %593 = sbr.rel (%p591) target = $region199
          $region196: #{tpu_custom_call.1} parent=191 // loop_body
            %v597 = vld [vmem:[%s595] sm:%s588]
            %598 = vst [vmem:[%s596] sm:%s588] %v597
          $region197: #{tpu_custom_call.1} parent=191 // loop_footer
            %s594 = sadd.s32 1, %s590
          $region198: #{tpu_custom_call.1} parent=191 // loop_footer_branch
            %589 = sbr.rel target = $region194
          $region199: #{tpu_custom_call.1} parent=191 // loop_exit
            _
        $region192: #{tpu_custom_call.1} parent=183 // pred_fallthru
          _
        // Predicated region
        $region211: #{tpu_custom_call.1} parent=183 // pred_check
          _
        $region212: #{tpu_custom_call.1} parent=183 // pred_check_branch
          %622 = sbr.rel (0) target = $region214
        $region213: #{tpu_custom_call.1} parent=183 // pred_region
          %623 = vsyncadd [#allocation3], 16
        $region214: #{tpu_custom_call.1} parent=183 // pred_fallthru
          _
      $region184: #{tpu_custom_call.1} parent=43 // pred_fallthru
        _
      %p624 = scmp.ge.s32.totalorder %s353, 0
      // Predicated region
      $region215: #{tpu_custom_call.1} parent=43 // pred_check
        %p625 = pneg %p624
      $region216: #{tpu_custom_call.1} parent=43 // pred_check_branch
        %627 = sbr.rel (%p625) target = $region218
      $region217: #{tpu_custom_call.1} parent=43 // pred_region
        %s628 = scalar_lea.vmem %s8, %s353
        %s629 = scalar_lea.vmem [#allocation2], 5
        %p631 = scmp.lt.u32.totalorder 1, 8
        %p632 = pneg %p631
        // Predicated region
        $region219: #{tpu_custom_call.1} parent=217 // pred_check
          _
        $region220: #{tpu_custom_call.1} parent=217 // pred_check_branch
          %634 = sbr.rel (%p631) target = $region222
        $region221: #{tpu_custom_call.1} parent=217 // pred_region
          %s649 = sand.u32 1, 7
          %p650 = scmp.eq.s32.totalorder %s649, 0
          %p651 = pneg %p650
          // Predicated region
          $region234: #{tpu_custom_call.1} parent=221 // pred_check
            _
          $region235: #{tpu_custom_call.1} parent=221 // pred_check_branch
            %653 = sbr.rel (%p650) target = $region237
          $region236: #{tpu_custom_call.1} parent=221 // pred_region
            %s654 = sand.u32 1, 7
            %s655 = ssub.s32 1, %s654
            %s656 = scalar_lea.vmem %s628, %s655
            %s657 = ssub.s32 1, %s654
            %s658 = scalar_lea.vmem %s629, %s657 [#allocation2]
            %s659 = sshllo.u32 0, %s654
            loop: start=0, step=1, limit=1
            $region238: #{tpu_custom_call.1} parent=236 // loop_pre_header
              _
            $region239: #{tpu_custom_call.1} parent=236 // loop_header
              %s661 = sphi 0, %s665
              %p662 = scmp.ge.s32.totalorder %s661, 1
              %s666 = sphi %s656, %s656
              %s667 = sphi %s658, %s658
            $region240: #{tpu_custom_call.1} parent=236 // loop_header_branch
              %664 = sbr.rel (%p662) target = $region244
            $region241: #{tpu_custom_call.1} parent=236 // loop_body
              %v668 = vld [vmem:[%s666] sm:%s659]
              %669 = vst [vmem:[%s667] sm:%s659] %v668
            $region242: #{tpu_custom_call.1} parent=236 // loop_footer
              %s665 = sadd.s32 1, %s661
            $region243: #{tpu_custom_call.1} parent=236 // loop_footer_branch
              %660 = sbr.rel target = $region239
            $region244: #{tpu_custom_call.1} parent=236 // loop_exit
              _
          $region237: #{tpu_custom_call.1} parent=221 // pred_fallthru
            _
        $region222: #{tpu_custom_call.1} parent=217 // pred_fallthru
          _
        // Predicated region
        $region223: #{tpu_custom_call.1} parent=217 // pred_check
          %p635 = pneg %p631
        $region224: #{tpu_custom_call.1} parent=217 // pred_check_branch
          %637 = sbr.rel (%p635) target = $region226
        $region225: #{tpu_custom_call.1} parent=217 // pred_region
          %s638 = sshllo.u32 0, 1
          loop: start=0, step=1, limit=1
          $region227: #{tpu_custom_call.1} parent=225 // loop_pre_header
            _
          $region228: #{tpu_custom_call.1} parent=225 // loop_header
            %s640 = sphi 0, %s644
            %p641 = scmp.ge.s32.totalorder %s640, 1
            %s645 = sphi %s628, %s628
            %s646 = sphi %s629, %s629
          $region229: #{tpu_custom_call.1} parent=225 // loop_header_branch
            %643 = sbr.rel (%p641) target = $region233
          $region230: #{tpu_custom_call.1} parent=225 // loop_body
            %v647 = vld [vmem:[%s645] sm:%s638]
            %648 = vst [vmem:[%s646] sm:%s638] %v647
          $region231: #{tpu_custom_call.1} parent=225 // loop_footer
            %s644 = sadd.s32 1, %s640
          $region232: #{tpu_custom_call.1} parent=225 // loop_footer_branch
            %639 = sbr.rel target = $region228
          $region233: #{tpu_custom_call.1} parent=225 // loop_exit
            _
        $region226: #{tpu_custom_call.1} parent=217 // pred_fallthru
          _
        // Predicated region
        $region245: #{tpu_custom_call.1} parent=217 // pred_check
          _
        $region246: #{tpu_custom_call.1} parent=217 // pred_check_branch
          %672 = sbr.rel (0) target = $region248
        $region247: #{tpu_custom_call.1} parent=217 // pred_region
          %673 = vsyncadd [#allocation3], 16
        $region248: #{tpu_custom_call.1} parent=217 // pred_fallthru
          _
      $region218: #{tpu_custom_call.1} parent=43 // pred_fallthru
        _
      %p674 = scmp.ge.s32.totalorder %s355, 0
      // Predicated region
      $region249: #{tpu_custom_call.1} parent=43 // pred_check
        %p675 = pneg %p674
      $region250: #{tpu_custom_call.1} parent=43 // pred_check_branch
        %677 = sbr.rel (%p675) target = $region252
      $region251: #{tpu_custom_call.1} parent=43 // pred_region
        %s678 = scalar_lea.vmem %s8, %s355
        %s679 = scalar_lea.vmem [#allocation2], 6
        %p681 = scmp.lt.u32.totalorder 1, 8
        %p682 = pneg %p681
        // Predicated region
        $region253: #{tpu_custom_call.1} parent=251 // pred_check
          _
        $region254: #{tpu_custom_call.1} parent=251 // pred_check_branch
          %684 = sbr.rel (%p681) target = $region256
        $region255: #{tpu_custom_call.1} parent=251 // pred_region
          %s699 = sand.u32 1, 7
          %p700 = scmp.eq.s32.totalorder %s699, 0
          %p701 = pneg %p700
          // Predicated region
          $region268: #{tpu_custom_call.1} parent=255 // pred_check
            _
          $region269: #{tpu_custom_call.1} parent=255 // pred_check_branch
            %703 = sbr.rel (%p700) target = $region271
          $region270: #{tpu_custom_call.1} parent=255 // pred_region
            %s704 = sand.u32 1, 7
            %s705 = ssub.s32 1, %s704
            %s706 = scalar_lea.vmem %s678, %s705
            %s707 = ssub.s32 1, %s704
            %s708 = scalar_lea.vmem %s679, %s707 [#allocation2]
            %s709 = sshllo.u32 0, %s704
            loop: start=0, step=1, limit=1
            $region272: #{tpu_custom_call.1} parent=270 // loop_pre_header
              _
            $region273: #{tpu_custom_call.1} parent=270 // loop_header
              %s711 = sphi 0, %s715
              %p712 = scmp.ge.s32.totalorder %s711, 1
              %s716 = sphi %s706, %s706
              %s717 = sphi %s708, %s708
            $region274: #{tpu_custom_call.1} parent=270 // loop_header_branch
              %714 = sbr.rel (%p712) target = $region278
            $region275: #{tpu_custom_call.1} parent=270 // loop_body
              %v718 = vld [vmem:[%s716] sm:%s709]
              %719 = vst [vmem:[%s717] sm:%s709] %v718
            $region276: #{tpu_custom_call.1} parent=270 // loop_footer
              %s715 = sadd.s32 1, %s711
            $region277: #{tpu_custom_call.1} parent=270 // loop_footer_branch
              %710 = sbr.rel target = $region273
            $region278: #{tpu_custom_call.1} parent=270 // loop_exit
              _
          $region271: #{tpu_custom_call.1} parent=255 // pred_fallthru
            _
        $region256: #{tpu_custom_call.1} parent=251 // pred_fallthru
          _
        // Predicated region
        $region257: #{tpu_custom_call.1} parent=251 // pred_check
          %p685 = pneg %p681
        $region258: #{tpu_custom_call.1} parent=251 // pred_check_branch
          %687 = sbr.rel (%p685) target = $region260
        $region259: #{tpu_custom_call.1} parent=251 // pred_region
          %s688 = sshllo.u32 0, 1
          loop: start=0, step=1, limit=1
          $region261: #{tpu_custom_call.1} parent=259 // loop_pre_header
            _
          $region262: #{tpu_custom_call.1} parent=259 // loop_header
            %s690 = sphi 0, %s694
            %p691 = scmp.ge.s32.totalorder %s690, 1
            %s695 = sphi %s678, %s678
            %s696 = sphi %s679, %s679
          $region263: #{tpu_custom_call.1} parent=259 // loop_header_branch
            %693 = sbr.rel (%p691) target = $region267
          $region264: #{tpu_custom_call.1} parent=259 // loop_body
            %v697 = vld [vmem:[%s695] sm:%s688]
            %698 = vst [vmem:[%s696] sm:%s688] %v697
          $region265: #{tpu_custom_call.1} parent=259 // loop_footer
            %s694 = sadd.s32 1, %s690
          $region266: #{tpu_custom_call.1} parent=259 // loop_footer_branch
            %689 = sbr.rel target = $region262
          $region267: #{tpu_custom_call.1} parent=259 // loop_exit
            _
        $region260: #{tpu_custom_call.1} parent=251 // pred_fallthru
          _
        // Predicated region
        $region279: #{tpu_custom_call.1} parent=251 // pred_check
          _
        $region280: #{tpu_custom_call.1} parent=251 // pred_check_branch
          %722 = sbr.rel (0) target = $region282
        $region281: #{tpu_custom_call.1} parent=251 // pred_region
          %723 = vsyncadd [#allocation3], 16
        $region282: #{tpu_custom_call.1} parent=251 // pred_fallthru
          _
      $region252: #{tpu_custom_call.1} parent=43 // pred_fallthru
        _
      %p724 = scmp.ge.s32.totalorder %s357, 0
      // Predicated region
      $region283: #{tpu_custom_call.1} parent=43 // pred_check
        %p725 = pneg %p724
      $region284: #{tpu_custom_call.1} parent=43 // pred_check_branch
        %727 = sbr.rel (%p725) target = $region286
      $region285: #{tpu_custom_call.1} parent=43 // pred_region
        %s728 = scalar_lea.vmem %s8, %s357
        %s729 = scalar_lea.vmem [#allocation2], 7
        %p731 = scmp.lt.u32.totalorder 1, 8
        %p732 = pneg %p731
        // Predicated region
        $region287: #{tpu_custom_call.1} parent=285 // pred_check
          _
        $region288: #{tpu_custom_call.1} parent=285 // pred_check_branch
          %734 = sbr.rel (%p731) target = $region290
        $region289: #{tpu_custom_call.1} parent=285 // pred_region
          %s749 = sand.u32 1, 7
          %p750 = scmp.eq.s32.totalorder %s749, 0
          %p751 = pneg %p750
          // Predicated region
          $region302: #{tpu_custom_call.1} parent=289 // pred_check
            _
          $region303: #{tpu_custom_call.1} parent=289 // pred_check_branch
            %753 = sbr.rel (%p750) target = $region305
          $region304: #{tpu_custom_call.1} parent=289 // pred_region
            %s754 = sand.u32 1, 7
            %s755 = ssub.s32 1, %s754
            %s756 = scalar_lea.vmem %s728, %s755
            %s757 = ssub.s32 1, %s754
            %s758 = scalar_lea.vmem %s729, %s757 [#allocation2]
            %s759 = sshllo.u32 0, %s754
            loop: start=0, step=1, limit=1
            $region306: #{tpu_custom_call.1} parent=304 // loop_pre_header
              _
            $region307: #{tpu_custom_call.1} parent=304 // loop_header
              %s761 = sphi 0, %s765
              %p762 = scmp.ge.s32.totalorder %s761, 1
              %s766 = sphi %s756, %s756
              %s767 = sphi %s758, %s758
            $region308: #{tpu_custom_call.1} parent=304 // loop_header_branch
              %764 = sbr.rel (%p762) target = $region312
            $region309: #{tpu_custom_call.1} parent=304 // loop_body
              %v768 = vld [vmem:[%s766] sm:%s759]
              %769 = vst [vmem:[%s767] sm:%s759] %v768
            $region310: #{tpu_custom_call.1} parent=304 // loop_footer
              %s765 = sadd.s32 1, %s761
            $region311: #{tpu_custom_call.1} parent=304 // loop_footer_branch
              %760 = sbr.rel target = $region307
            $region312: #{tpu_custom_call.1} parent=304 // loop_exit
              _
          $region305: #{tpu_custom_call.1} parent=289 // pred_fallthru
            _
        $region290: #{tpu_custom_call.1} parent=285 // pred_fallthru
          _
        // Predicated region
        $region291: #{tpu_custom_call.1} parent=285 // pred_check
          %p735 = pneg %p731
        $region292: #{tpu_custom_call.1} parent=285 // pred_check_branch
          %737 = sbr.rel (%p735) target = $region294
        $region293: #{tpu_custom_call.1} parent=285 // pred_region
          %s738 = sshllo.u32 0, 1
          loop: start=0, step=1, limit=1
          $region295: #{tpu_custom_call.1} parent=293 // loop_pre_header
            _
          $region296: #{tpu_custom_call.1} parent=293 // loop_header
            %s740 = sphi 0, %s744
            %p741 = scmp.ge.s32.totalorder %s740, 1
            %s745 = sphi %s728, %s728
            %s746 = sphi %s729, %s729
          $region297: #{tpu_custom_call.1} parent=293 // loop_header_branch
            %743 = sbr.rel (%p741) target = $region301
          $region298: #{tpu_custom_call.1} parent=293 // loop_body
            %v747 = vld [vmem:[%s745] sm:%s738]
            %748 = vst [vmem:[%s746] sm:%s738] %v747
          $region299: #{tpu_custom_call.1} parent=293 // loop_footer
            %s744 = sadd.s32 1, %s740
          $region300: #{tpu_custom_call.1} parent=293 // loop_footer_branch
            %739 = sbr.rel target = $region296
          $region301: #{tpu_custom_call.1} parent=293 // loop_exit
            _
        $region294: #{tpu_custom_call.1} parent=285 // pred_fallthru
          _
        // Predicated region
        $region313: #{tpu_custom_call.1} parent=285 // pred_check
          _
        $region314: #{tpu_custom_call.1} parent=285 // pred_check_branch
          %772 = sbr.rel (0) target = $region316
        $region315: #{tpu_custom_call.1} parent=285 // pred_region
          %773 = vsyncadd [#allocation3], 16
        $region316: #{tpu_custom_call.1} parent=285 // pred_fallthru
          _
      $region286: #{tpu_custom_call.1} parent=43 // pred_fallthru
        _
      %p774 = scmp.ge.s32.totalorder %s359, 0
      // Predicated region
      $region317: #{tpu_custom_call.1} parent=43 // pred_check
        %p775 = pneg %p774
      $region318: #{tpu_custom_call.1} parent=43 // pred_check_branch
        %777 = sbr.rel (%p775) target = $region320
      $region319: #{tpu_custom_call.1} parent=43 // pred_region
        %s778 = scalar_lea.vmem %s8, %s359
        %s779 = scalar_lea.vmem [#allocation2], 8
        %p781 = scmp.lt.u32.totalorder 1, 8
        %p782 = pneg %p781
        // Predicated region
        $region321: #{tpu_custom_call.1} parent=319 // pred_check
          _
        $region322: #{tpu_custom_call.1} parent=319 // pred_check_branch
          %784 = sbr.rel (%p781) target = $region324
        $region323: #{tpu_custom_call.1} parent=319 // pred_region
          %s799 = sand.u32 1, 7
          %p800 = scmp.eq.s32.totalorder %s799, 0
          %p801 = pneg %p800
          // Predicated region
          $region336: #{tpu_custom_call.1} parent=323 // pred_check
            _
          $region337: #{tpu_custom_call.1} parent=323 // pred_check_branch
            %803 = sbr.rel (%p800) target = $region339
          $region338: #{tpu_custom_call.1} parent=323 // pred_region
            %s804 = sand.u32 1, 7
            %s805 = ssub.s32 1, %s804
            %s806 = scalar_lea.vmem %s778, %s805
            %s807 = ssub.s32 1, %s804
            %s808 = scalar_lea.vmem %s779, %s807 [#allocation2]
            %s809 = sshllo.u32 0, %s804
            loop: start=0, step=1, limit=1
            $region340: #{tpu_custom_call.1} parent=338 // loop_pre_header
              _
            $region341: #{tpu_custom_call.1} parent=338 // loop_header
              %s811 = sphi 0, %s815
              %p812 = scmp.ge.s32.totalorder %s811, 1
              %s816 = sphi %s806, %s806
              %s817 = sphi %s808, %s808
            $region342: #{tpu_custom_call.1} parent=338 // loop_header_branch
              %814 = sbr.rel (%p812) target = $region346
            $region343: #{tpu_custom_call.1} parent=338 // loop_body
              %v818 = vld [vmem:[%s816] sm:%s809]
              %819 = vst [vmem:[%s817] sm:%s809] %v818
            $region344: #{tpu_custom_call.1} parent=338 // loop_footer
              %s815 = sadd.s32 1, %s811
            $region345: #{tpu_custom_call.1} parent=338 // loop_footer_branch
              %810 = sbr.rel target = $region341
            $region346: #{tpu_custom_call.1} parent=338 // loop_exit
              _
          $region339: #{tpu_custom_call.1} parent=323 // pred_fallthru
            _
        $region324: #{tpu_custom_call.1} parent=319 // pred_fallthru
          _
        // Predicated region
        $region325: #{tpu_custom_call.1} parent=319 // pred_check
          %p785 = pneg %p781
        $region326: #{tpu_custom_call.1} parent=319 // pred_check_branch
          %787 = sbr.rel (%p785) target = $region328
        $region327: #{tpu_custom_call.1} parent=319 // pred_region
          %s788 = sshllo.u32 0, 1
          loop: start=0, step=1, limit=1
          $region329: #{tpu_custom_call.1} parent=327 // loop_pre_header
            _
          $region330: #{tpu_custom_call.1} parent=327 // loop_header
            %s790 = sphi 0, %s794
            %p791 = scmp.ge.s32.totalorder %s790, 1
            %s795 = sphi %s778, %s778
            %s796 = sphi %s779, %s779
          $region331: #{tpu_custom_call.1} parent=327 // loop_header_branch
            %793 = sbr.rel (%p791) target = $region335
          $region332: #{tpu_custom_call.1} parent=327 // loop_body
            %v797 = vld [vmem:[%s795] sm:%s788]
            %798 = vst [vmem:[%s796] sm:%s788] %v797
          $region333: #{tpu_custom_call.1} parent=327 // loop_footer
            %s794 = sadd.s32 1, %s790
          $region334: #{tpu_custom_call.1} parent=327 // loop_footer_branch
            %789 = sbr.rel target = $region330
          $region335: #{tpu_custom_call.1} parent=327 // loop_exit
            _
        $region328: #{tpu_custom_call.1} parent=319 // pred_fallthru
          _
        // Predicated region
        $region347: #{tpu_custom_call.1} parent=319 // pred_check
          _
        $region348: #{tpu_custom_call.1} parent=319 // pred_check_branch
          %822 = sbr.rel (0) target = $region350
        $region349: #{tpu_custom_call.1} parent=319 // pred_region
          %823 = vsyncadd [#allocation3], 16
        $region350: #{tpu_custom_call.1} parent=319 // pred_fallthru
          _
      $region320: #{tpu_custom_call.1} parent=43 // pred_fallthru
        _
      %p824 = scmp.ge.s32.totalorder %s361, 0
      // Predicated region
      $region351: #{tpu_custom_call.1} parent=43 // pred_check
        %p825 = pneg %p824
      $region352: #{tpu_custom_call.1} parent=43 // pred_check_branch
        %827 = sbr.rel (%p825) target = $region354
      $region353: #{tpu_custom_call.1} parent=43 // pred_region
        %s828 = scalar_lea.vmem %s8, %s361
        %s829 = scalar_lea.vmem [#allocation2], 9
        %p831 = scmp.lt.u32.totalorder 1, 8
        %p832 = pneg %p831
        // Predicated region
        $region355: #{tpu_custom_call.1} parent=353 // pred_check
          _
        $region356: #{tpu_custom_call.1} parent=353 // pred_check_branch
          %834 = sbr.rel (%p831) target = $region358
        $region357: #{tpu_custom_call.1} parent=353 // pred_region
          %s849 = sand.u32 1, 7
          %p850 = scmp.eq.s32.totalorder %s849, 0
          %p851 = pneg %p850
          // Predicated region
          $region370: #{tpu_custom_call.1} parent=357 // pred_check
            _
          $region371: #{tpu_custom_call.1} parent=357 // pred_check_branch
            %853 = sbr.rel (%p850) target = $region373
          $region372: #{tpu_custom_call.1} parent=357 // pred_region
            %s854 = sand.u32 1, 7
            %s855 = ssub.s32 1, %s854
            %s856 = scalar_lea.vmem %s828, %s855
            %s857 = ssub.s32 1, %s854
            %s858 = scalar_lea.vmem %s829, %s857 [#allocation2]
            %s859 = sshllo.u32 0, %s854
            loop: start=0, step=1, limit=1
            $region374: #{tpu_custom_call.1} parent=372 // loop_pre_header
              _
            $region375: #{tpu_custom_call.1} parent=372 // loop_header
              %s861 = sphi 0, %s865
              %p862 = scmp.ge.s32.totalorder %s861, 1
              %s866 = sphi %s856, %s856
              %s867 = sphi %s858, %s858
            $region376: #{tpu_custom_call.1} parent=372 // loop_header_branch
              %864 = sbr.rel (%p862) target = $region380
            $region377: #{tpu_custom_call.1} parent=372 // loop_body
              %v868 = vld [vmem:[%s866] sm:%s859]
              %869 = vst [vmem:[%s867] sm:%s859] %v868
            $region378: #{tpu_custom_call.1} parent=372 // loop_footer
              %s865 = sadd.s32 1, %s861
            $region379: #{tpu_custom_call.1} parent=372 // loop_footer_branch
              %860 = sbr.rel target = $region375
            $region380: #{tpu_custom_call.1} parent=372 // loop_exit
              _
          $region373: #{tpu_custom_call.1} parent=357 // pred_fallthru
            _
        $region358: #{tpu_custom_call.1} parent=353 // pred_fallthru
          _
        // Predicated region
        $region359: #{tpu_custom_call.1} parent=353 // pred_check
          %p835 = pneg %p831
        $region360: #{tpu_custom_call.1} parent=353 // pred_check_branch
          %837 = sbr.rel (%p835) target = $region362
        $region361: #{tpu_custom_call.1} parent=353 // pred_region
          %s838 = sshllo.u32 0, 1
          loop: start=0, step=1, limit=1
          $region363: #{tpu_custom_call.1} parent=361 // loop_pre_header
            _
          $region364: #{tpu_custom_call.1} parent=361 // loop_header
            %s840 = sphi 0, %s844
            %p841 = scmp.ge.s32.totalorder %s840, 1
            %s845 = sphi %s828, %s828
            %s846 = sphi %s829, %s829
          $region365: #{tpu_custom_call.1} parent=361 // loop_header_branch
            %843 = sbr.rel (%p841) target = $region369
          $region366: #{tpu_custom_call.1} parent=361 // loop_body
            %v847 = vld [vmem:[%s845] sm:%s838]
            %848 = vst [vmem:[%s846] sm:%s838] %v847
          $region367: #{tpu_custom_call.1} parent=361 // loop_footer
            %s844 = sadd.s32 1, %s840
          $region368: #{tpu_custom_call.1} parent=361 // loop_footer_branch
            %839 = sbr.rel target = $region364
          $region369: #{tpu_custom_call.1} parent=361 // loop_exit
            _
        $region362: #{tpu_custom_call.1} parent=353 // pred_fallthru
          _
        // Predicated region
        $region381: #{tpu_custom_call.1} parent=353 // pred_check
          _
        $region382: #{tpu_custom_call.1} parent=353 // pred_check_branch
          %872 = sbr.rel (0) target = $region384
        $region383: #{tpu_custom_call.1} parent=353 // pred_region
          %873 = vsyncadd [#allocation3], 16
        $region384: #{tpu_custom_call.1} parent=353 // pred_fallthru
          _
      $region354: #{tpu_custom_call.1} parent=43 // pred_fallthru
        _
      %p874 = scmp.ge.s32.totalorder %s363, 0
      // Predicated region
      $region385: #{tpu_custom_call.1} parent=43 // pred_check
        %p875 = pneg %p874
      $region386: #{tpu_custom_call.1} parent=43 // pred_check_branch
        %877 = sbr.rel (%p875) target = $region388
      $region387: #{tpu_custom_call.1} parent=43 // pred_region
        %s878 = scalar_lea.vmem %s8, %s363
        %s879 = scalar_lea.vmem [#allocation2], 10
        %p881 = scmp.lt.u32.totalorder 1, 8
        %p882 = pneg %p881
        // Predicated region
        $region389: #{tpu_custom_call.1} parent=387 // pred_check
          _
        $region390: #{tpu_custom_call.1} parent=387 // pred_check_branch
          %884 = sbr.rel (%p881) target = $region392
        $region391: #{tpu_custom_call.1} parent=387 // pred_region
          %s899 = sand.u32 1, 7
          %p900 = scmp.eq.s32.totalorder %s899, 0
          %p901 = pneg %p900
          // Predicated region
          $region404: #{tpu_custom_call.1} parent=391 // pred_check
            _
          $region405: #{tpu_custom_call.1} parent=391 // pred_check_branch
            %903 = sbr.rel (%p900) target = $region407
          $region406: #{tpu_custom_call.1} parent=391 // pred_region
            %s904 = sand.u32 1, 7
            %s905 = ssub.s32 1, %s904
            %s906 = scalar_lea.vmem %s878, %s905
            %s907 = ssub.s32 1, %s904
            %s908 = scalar_lea.vmem %s879, %s907 [#allocation2]
            %s909 = sshllo.u32 0, %s904
            loop: start=0, step=1, limit=1
            $region408: #{tpu_custom_call.1} parent=406 // loop_pre_header
              _
            $region409: #{tpu_custom_call.1} parent=406 // loop_header
              %s911 = sphi 0, %s915
              %p912 = scmp.ge.s32.totalorder %s911, 1
              %s916 = sphi %s906, %s906
              %s917 = sphi %s908, %s908
            $region410: #{tpu_custom_call.1} parent=406 // loop_header_branch
              %914 = sbr.rel (%p912) target = $region414
            $region411: #{tpu_custom_call.1} parent=406 // loop_body
              %v918 = vld [vmem:[%s916] sm:%s909]
              %919 = vst [vmem:[%s917] sm:%s909] %v918
            $region412: #{tpu_custom_call.1} parent=406 // loop_footer
              %s915 = sadd.s32 1, %s911
            $region413: #{tpu_custom_call.1} parent=406 // loop_footer_branch
              %910 = sbr.rel target = $region409
            $region414: #{tpu_custom_call.1} parent=406 // loop_exit
              _
          $region407: #{tpu_custom_call.1} parent=391 // pred_fallthru
            _
        $region392: #{tpu_custom_call.1} parent=387 // pred_fallthru
          _
        // Predicated region
        $region393: #{tpu_custom_call.1} parent=387 // pred_check
          %p885 = pneg %p881
        $region394: #{tpu_custom_call.1} parent=387 // pred_check_branch
          %887 = sbr.rel (%p885) target = $region396
        $region395: #{tpu_custom_call.1} parent=387 // pred_region
          %s888 = sshllo.u32 0, 1
          loop: start=0, step=1, limit=1
          $region397: #{tpu_custom_call.1} parent=395 // loop_pre_header
            _
          $region398: #{tpu_custom_call.1} parent=395 // loop_header
            %s890 = sphi 0, %s894
            %p891 = scmp.ge.s32.totalorder %s890, 1
            %s895 = sphi %s878, %s878
            %s896 = sphi %s879, %s879
          $region399: #{tpu_custom_call.1} parent=395 // loop_header_branch
            %893 = sbr.rel (%p891) target = $region403
          $region400: #{tpu_custom_call.1} parent=395 // loop_body
            %v897 = vld [vmem:[%s895] sm:%s888]
            %898 = vst [vmem:[%s896] sm:%s888] %v897
          $region401: #{tpu_custom_call.1} parent=395 // loop_footer
            %s894 = sadd.s32 1, %s890
          $region402: #{tpu_custom_call.1} parent=395 // loop_footer_branch
            %889 = sbr.rel target = $region398
          $region403: #{tpu_custom_call.1} parent=395 // loop_exit
            _
        $region396: #{tpu_custom_call.1} parent=387 // pred_fallthru
          _
        // Predicated region
        $region415: #{tpu_custom_call.1} parent=387 // pred_check
          _
        $region416: #{tpu_custom_call.1} parent=387 // pred_check_branch
          %922 = sbr.rel (0) target = $region418
        $region417: #{tpu_custom_call.1} parent=387 // pred_region
          %923 = vsyncadd [#allocation3], 16
        $region418: #{tpu_custom_call.1} parent=387 // pred_fallthru
          _
      $region388: #{tpu_custom_call.1} parent=43 // pred_fallthru
        _
      %p924 = scmp.ge.s32.totalorder %s365, 0
      // Predicated region
      $region419: #{tpu_custom_call.1} parent=43 // pred_check
        %p925 = pneg %p924
      $region420: #{tpu_custom_call.1} parent=43 // pred_check_branch
        %927 = sbr.rel (%p925) target = $region422
      $region421: #{tpu_custom_call.1} parent=43 // pred_region
        %s928 = scalar_lea.vmem %s8, %s365
        %s929 = scalar_lea.vmem [#allocation2], 11
        %p931 = scmp.lt.u32.totalorder 1, 8
        %p932 = pneg %p931
        // Predicated region
        $region423: #{tpu_custom_call.1} parent=421 // pred_check
          _
        $region424: #{tpu_custom_call.1} parent=421 // pred_check_branch
          %934 = sbr.rel (%p931) target = $region426
        $region425: #{tpu_custom_call.1} parent=421 // pred_region
          %s949 = sand.u32 1, 7
          %p950 = scmp.eq.s32.totalorder %s949, 0
          %p951 = pneg %p950
          // Predicated region
          $region438: #{tpu_custom_call.1} parent=425 // pred_check
            _
          $region439: #{tpu_custom_call.1} parent=425 // pred_check_branch
            %953 = sbr.rel (%p950) target = $region441
          $region440: #{tpu_custom_call.1} parent=425 // pred_region
            %s954 = sand.u32 1, 7
            %s955 = ssub.s32 1, %s954
            %s956 = scalar_lea.vmem %s928, %s955
            %s957 = ssub.s32 1, %s954
            %s958 = scalar_lea.vmem %s929, %s957 [#allocation2]
            %s959 = sshllo.u32 0, %s954
            loop: start=0, step=1, limit=1
            $region442: #{tpu_custom_call.1} parent=440 // loop_pre_header
              _
            $region443: #{tpu_custom_call.1} parent=440 // loop_header
              %s961 = sphi 0, %s965
              %p962 = scmp.ge.s32.totalorder %s961, 1
              %s966 = sphi %s956, %s956
              %s967 = sphi %s958, %s958
            $region444: #{tpu_custom_call.1} parent=440 // loop_header_branch
              %964 = sbr.rel (%p962) target = $region448
            $region445: #{tpu_custom_call.1} parent=440 // loop_body
              %v968 = vld [vmem:[%s966] sm:%s959]
              %969 = vst [vmem:[%s967] sm:%s959] %v968
            $region446: #{tpu_custom_call.1} parent=440 // loop_footer
              %s965 = sadd.s32 1, %s961
            $region447: #{tpu_custom_call.1} parent=440 // loop_footer_branch
              %960 = sbr.rel target = $region443
            $region448: #{tpu_custom_call.1} parent=440 // loop_exit
              _
          $region441: #{tpu_custom_call.1} parent=425 // pred_fallthru
            _
        $region426: #{tpu_custom_call.1} parent=421 // pred_fallthru
          _
        // Predicated region
        $region427: #{tpu_custom_call.1} parent=421 // pred_check
          %p935 = pneg %p931
        $region428: #{tpu_custom_call.1} parent=421 // pred_check_branch
          %937 = sbr.rel (%p935) target = $region430
        $region429: #{tpu_custom_call.1} parent=421 // pred_region
          %s938 = sshllo.u32 0, 1
          loop: start=0, step=1, limit=1
          $region431: #{tpu_custom_call.1} parent=429 // loop_pre_header
            _
          $region432: #{tpu_custom_call.1} parent=429 // loop_header
            %s940 = sphi 0, %s944
            %p941 = scmp.ge.s32.totalorder %s940, 1
            %s945 = sphi %s928, %s928
            %s946 = sphi %s929, %s929
          $region433: #{tpu_custom_call.1} parent=429 // loop_header_branch
            %943 = sbr.rel (%p941) target = $region437
          $region434: #{tpu_custom_call.1} parent=429 // loop_body
            %v947 = vld [vmem:[%s945] sm:%s938]
            %948 = vst [vmem:[%s946] sm:%s938] %v947
          $region435: #{tpu_custom_call.1} parent=429 // loop_footer
            %s944 = sadd.s32 1, %s940
          $region436: #{tpu_custom_call.1} parent=429 // loop_footer_branch
            %939 = sbr.rel target = $region432
          $region437: #{tpu_custom_call.1} parent=429 // loop_exit
            _
        $region430: #{tpu_custom_call.1} parent=421 // pred_fallthru
          _
        // Predicated region
        $region449: #{tpu_custom_call.1} parent=421 // pred_check
          _
        $region450: #{tpu_custom_call.1} parent=421 // pred_check_branch
          %972 = sbr.rel (0) target = $region452
        $region451: #{tpu_custom_call.1} parent=421 // pred_region
          %973 = vsyncadd [#allocation3], 16
        $region452: #{tpu_custom_call.1} parent=421 // pred_fallthru
          _
      $region422: #{tpu_custom_call.1} parent=43 // pred_fallthru
        _
      %p974 = scmp.ge.s32.totalorder %s367, 0
      // Predicated region
      $region453: #{tpu_custom_call.1} parent=43 // pred_check
        %p975 = pneg %p974
      $region454: #{tpu_custom_call.1} parent=43 // pred_check_branch
        %977 = sbr.rel (%p975) target = $region456
      $region455: #{tpu_custom_call.1} parent=43 // pred_region
        %s978 = scalar_lea.vmem %s8, %s367
        %s979 = scalar_lea.vmem [#allocation2], 12
        %p981 = scmp.lt.u32.totalorder 1, 8
        %p982 = pneg %p981
        // Predicated region
        $region457: #{tpu_custom_call.1} parent=455 // pred_check
          _
        $region458: #{tpu_custom_call.1} parent=455 // pred_check_branch
          %984 = sbr.rel (%p981) target = $region460
        $region459: #{tpu_custom_call.1} parent=455 // pred_region
          %s999 = sand.u32 1, 7
          %p1000 = scmp.eq.s32.totalorder %s999, 0
          %p1001 = pneg %p1000
          // Predicated region
          $region472: #{tpu_custom_call.1} parent=459 // pred_check
            _
          $region473: #{tpu_custom_call.1} parent=459 // pred_check_branch
            %1003 = sbr.rel (%p1000) target = $region475
          $region474: #{tpu_custom_call.1} parent=459 // pred_region
            %s1004 = sand.u32 1, 7
            %s1005 = ssub.s32 1, %s1004
            %s1006 = scalar_lea.vmem %s978, %s1005
            %s1007 = ssub.s32 1, %s1004
            %s1008 = scalar_lea.vmem %s979, %s1007 [#allocation2]
            %s1009 = sshllo.u32 0, %s1004
            loop: start=0, step=1, limit=1
            $region476: #{tpu_custom_call.1} parent=474 // loop_pre_header
              _
            $region477: #{tpu_custom_call.1} parent=474 // loop_header
              %s1011 = sphi 0, %s1015
              %p1012 = scmp.ge.s32.totalorder %s1011, 1
              %s1016 = sphi %s1006, %s1006
              %s1017 = sphi %s1008, %s1008
            $region478: #{tpu_custom_call.1} parent=474 // loop_header_branch
              %1014 = sbr.rel (%p1012) target = $region482
            $region479: #{tpu_custom_call.1} parent=474 // loop_body
              %v1018 = vld [vmem:[%s1016] sm:%s1009]
              %1019 = vst [vmem:[%s1017] sm:%s1009] %v1018
            $region480: #{tpu_custom_call.1} parent=474 // loop_footer
              %s1015 = sadd.s32 1, %s1011
            $region481: #{tpu_custom_call.1} parent=474 // loop_footer_branch
              %1010 = sbr.rel target = $region477
            $region482: #{tpu_custom_call.1} parent=474 // loop_exit
              _
          $region475: #{tpu_custom_call.1} parent=459 // pred_fallthru
            _
        $region460: #{tpu_custom_call.1} parent=455 // pred_fallthru
          _
        // Predicated region
        $region461: #{tpu_custom_call.1} parent=455 // pred_check
          %p985 = pneg %p981
        $region462: #{tpu_custom_call.1} parent=455 // pred_check_branch
          %987 = sbr.rel (%p985) target = $region464
        $region463: #{tpu_custom_call.1} parent=455 // pred_region
          %s988 = sshllo.u32 0, 1
          loop: start=0, step=1, limit=1
          $region465: #{tpu_custom_call.1} parent=463 // loop_pre_header
            _
          $region466: #{tpu_custom_call.1} parent=463 // loop_header
            %s990 = sphi 0, %s994
            %p991 = scmp.ge.s32.totalorder %s990, 1
            %s995 = sphi %s978, %s978
            %s996 = sphi %s979, %s979
          $region467: #{tpu_custom_call.1} parent=463 // loop_header_branch
            %993 = sbr.rel (%p991) target = $region471
          $region468: #{tpu_custom_call.1} parent=463 // loop_body
            %v997 = vld [vmem:[%s995] sm:%s988]
            %998 = vst [vmem:[%s996] sm:%s988] %v997
          $region469: #{tpu_custom_call.1} parent=463 // loop_footer
            %s994 = sadd.s32 1, %s990
          $region470: #{tpu_custom_call.1} parent=463 // loop_footer_branch
            %989 = sbr.rel target = $region466
          $region471: #{tpu_custom_call.1} parent=463 // loop_exit
            _
        $region464: #{tpu_custom_call.1} parent=455 // pred_fallthru
          _
        // Predicated region
        $region483: #{tpu_custom_call.1} parent=455 // pred_check
          _
        $region484: #{tpu_custom_call.1} parent=455 // pred_check_branch
          %1022 = sbr.rel (0) target = $region486
        $region485: #{tpu_custom_call.1} parent=455 // pred_region
          %1023 = vsyncadd [#allocation3], 16
        $region486: #{tpu_custom_call.1} parent=455 // pred_fallthru
          _
      $region456: #{tpu_custom_call.1} parent=43 // pred_fallthru
        _
      %p1024 = scmp.ge.s32.totalorder %s369, 0
      // Predicated region
      $region487: #{tpu_custom_call.1} parent=43 // pred_check
        %p1025 = pneg %p1024
      $region488: #{tpu_custom_call.1} parent=43 // pred_check_branch
        %1027 = sbr.rel (%p1025) target = $region490
      $region489: #{tpu_custom_call.1} parent=43 // pred_region
        %s1028 = scalar_lea.vmem %s8, %s369
        %s1029 = scalar_lea.vmem [#allocation2], 13
        %p1031 = scmp.lt.u32.totalorder 1, 8
        %p1032 = pneg %p1031
        // Predicated region
        $region491: #{tpu_custom_call.1} parent=489 // pred_check
          _
        $region492: #{tpu_custom_call.1} parent=489 // pred_check_branch
          %1034 = sbr.rel (%p1031) target = $region494
        $region493: #{tpu_custom_call.1} parent=489 // pred_region
          %s1049 = sand.u32 1, 7
          %p1050 = scmp.eq.s32.totalorder %s1049, 0
          %p1051 = pneg %p1050
          // Predicated region
          $region506: #{tpu_custom_call.1} parent=493 // pred_check
            _
          $region507: #{tpu_custom_call.1} parent=493 // pred_check_branch
            %1053 = sbr.rel (%p1050) target = $region509
          $region508: #{tpu_custom_call.1} parent=493 // pred_region
            %s1054 = sand.u32 1, 7
            %s1055 = ssub.s32 1, %s1054
            %s1056 = scalar_lea.vmem %s1028, %s1055
            %s1057 = ssub.s32 1, %s1054
            %s1058 = scalar_lea.vmem %s1029, %s1057 [#allocation2]
            %s1059 = sshllo.u32 0, %s1054
            loop: start=0, step=1, limit=1
            $region510: #{tpu_custom_call.1} parent=508 // loop_pre_header
              _
            $region511: #{tpu_custom_call.1} parent=508 // loop_header
              %s1061 = sphi 0, %s1065
              %p1062 = scmp.ge.s32.totalorder %s1061, 1
              %s1066 = sphi %s1056, %s1056
              %s1067 = sphi %s1058, %s1058
            $region512: #{tpu_custom_call.1} parent=508 // loop_header_branch
              %1064 = sbr.rel (%p1062) target = $region516
            $region513: #{tpu_custom_call.1} parent=508 // loop_body
              %v1068 = vld [vmem:[%s1066] sm:%s1059]
              %1069 = vst [vmem:[%s1067] sm:%s1059] %v1068
            $region514: #{tpu_custom_call.1} parent=508 // loop_footer
              %s1065 = sadd.s32 1, %s1061
            $region515: #{tpu_custom_call.1} parent=508 // loop_footer_branch
              %1060 = sbr.rel target = $region511
            $region516: #{tpu_custom_call.1} parent=508 // loop_exit
              _
          $region509: #{tpu_custom_call.1} parent=493 // pred_fallthru
            _
        $region494: #{tpu_custom_call.1} parent=489 // pred_fallthru
          _
        // Predicated region
        $region495: #{tpu_custom_call.1} parent=489 // pred_check
          %p1035 = pneg %p1031
        $region496: #{tpu_custom_call.1} parent=489 // pred_check_branch
          %1037 = sbr.rel (%p1035) target = $region498
        $region497: #{tpu_custom_call.1} parent=489 // pred_region
          %s1038 = sshllo.u32 0, 1
          loop: start=0, step=1, limit=1
          $region499: #{tpu_custom_call.1} parent=497 // loop_pre_header
            _
          $region500: #{tpu_custom_call.1} parent=497 // loop_header
            %s1040 = sphi 0, %s1044
            %p1041 = scmp.ge.s32.totalorder %s1040, 1
            %s1045 = sphi %s1028, %s1028
            %s1046 = sphi %s1029, %s1029
          $region501: #{tpu_custom_call.1} parent=497 // loop_header_branch
            %1043 = sbr.rel (%p1041) target = $region505
          $region502: #{tpu_custom_call.1} parent=497 // loop_body
            %v1047 = vld [vmem:[%s1045] sm:%s1038]
            %1048 = vst [vmem:[%s1046] sm:%s1038] %v1047
          $region503: #{tpu_custom_call.1} parent=497 // loop_footer
            %s1044 = sadd.s32 1, %s1040
          $region504: #{tpu_custom_call.1} parent=497 // loop_footer_branch
            %1039 = sbr.rel target = $region500
          $region505: #{tpu_custom_call.1} parent=497 // loop_exit
            _
        $region498: #{tpu_custom_call.1} parent=489 // pred_fallthru
          _
        // Predicated region
        $region517: #{tpu_custom_call.1} parent=489 // pred_check
          _
        $region518: #{tpu_custom_call.1} parent=489 // pred_check_branch
          %1072 = sbr.rel (0) target = $region520
        $region519: #{tpu_custom_call.1} parent=489 // pred_region
          %1073 = vsyncadd [#allocation3], 16
        $region520: #{tpu_custom_call.1} parent=489 // pred_fallthru
          _
      $region490: #{tpu_custom_call.1} parent=43 // pred_fallthru
        _
      %p1074 = scmp.ge.s32.totalorder %s371, 0
      // Predicated region
      $region521: #{tpu_custom_call.1} parent=43 // pred_check
        %p1075 = pneg %p1074
      $region522: #{tpu_custom_call.1} parent=43 // pred_check_branch
        %1077 = sbr.rel (%p1075) target = $region524
      $region523: #{tpu_custom_call.1} parent=43 // pred_region
        %s1078 = scalar_lea.vmem %s8, %s371
        %s1079 = scalar_lea.vmem [#allocation2], 14
        %p1081 = scmp.lt.u32.totalorder 1, 8
        %p1082 = pneg %p1081
        // Predicated region
        $region525: #{tpu_custom_call.1} parent=523 // pred_check
          _
        $region526: #{tpu_custom_call.1} parent=523 // pred_check_branch
          %1084 = sbr.rel (%p1081) target = $region528
        $region527: #{tpu_custom_call.1} parent=523 // pred_region
          %s1099 = sand.u32 1, 7
          %p1100 = scmp.eq.s32.totalorder %s1099, 0
          %p1101 = pneg %p1100
          // Predicated region
          $region540: #{tpu_custom_call.1} parent=527 // pred_check
            _
          $region541: #{tpu_custom_call.1} parent=527 // pred_check_branch
            %1103 = sbr.rel (%p1100) target = $region543
          $region542: #{tpu_custom_call.1} parent=527 // pred_region
            %s1104 = sand.u32 1, 7
            %s1105 = ssub.s32 1, %s1104
            %s1106 = scalar_lea.vmem %s1078, %s1105
            %s1107 = ssub.s32 1, %s1104
            %s1108 = scalar_lea.vmem %s1079, %s1107 [#allocation2]
            %s1109 = sshllo.u32 0, %s1104
            loop: start=0, step=1, limit=1
            $region544: #{tpu_custom_call.1} parent=542 // loop_pre_header
              _
            $region545: #{tpu_custom_call.1} parent=542 // loop_header
              %s1111 = sphi 0, %s1115
              %p1112 = scmp.ge.s32.totalorder %s1111, 1
              %s1116 = sphi %s1106, %s1106
              %s1117 = sphi %s1108, %s1108
            $region546: #{tpu_custom_call.1} parent=542 // loop_header_branch
              %1114 = sbr.rel (%p1112) target = $region550
            $region547: #{tpu_custom_call.1} parent=542 // loop_body
              %v1118 = vld [vmem:[%s1116] sm:%s1109]
              %1119 = vst [vmem:[%s1117] sm:%s1109] %v1118
            $region548: #{tpu_custom_call.1} parent=542 // loop_footer
              %s1115 = sadd.s32 1, %s1111
            $region549: #{tpu_custom_call.1} parent=542 // loop_footer_branch
              %1110 = sbr.rel target = $region545
            $region550: #{tpu_custom_call.1} parent=542 // loop_exit
              _
          $region543: #{tpu_custom_call.1} parent=527 // pred_fallthru
            _
        $region528: #{tpu_custom_call.1} parent=523 // pred_fallthru
          _
        // Predicated region
        $region529: #{tpu_custom_call.1} parent=523 // pred_check
          %p1085 = pneg %p1081
        $region530: #{tpu_custom_call.1} parent=523 // pred_check_branch
          %1087 = sbr.rel (%p1085) target = $region532
        $region531: #{tpu_custom_call.1} parent=523 // pred_region
          %s1088 = sshllo.u32 0, 1
          loop: start=0, step=1, limit=1
          $region533: #{tpu_custom_call.1} parent=531 // loop_pre_header
            _
          $region534: #{tpu_custom_call.1} parent=531 // loop_header
            %s1090 = sphi 0, %s1094
            %p1091 = scmp.ge.s32.totalorder %s1090, 1
            %s1095 = sphi %s1078, %s1078
            %s1096 = sphi %s1079, %s1079
          $region535: #{tpu_custom_call.1} parent=531 // loop_header_branch
            %1093 = sbr.rel (%p1091) target = $region539
          $region536: #{tpu_custom_call.1} parent=531 // loop_body
            %v1097 = vld [vmem:[%s1095] sm:%s1088]
            %1098 = vst [vmem:[%s1096] sm:%s1088] %v1097
          $region537: #{tpu_custom_call.1} parent=531 // loop_footer
            %s1094 = sadd.s32 1, %s1090
          $region538: #{tpu_custom_call.1} parent=531 // loop_footer_branch
            %1089 = sbr.rel target = $region534
          $region539: #{tpu_custom_call.1} parent=531 // loop_exit
            _
        $region532: #{tpu_custom_call.1} parent=523 // pred_fallthru
          _
        // Predicated region
        $region551: #{tpu_custom_call.1} parent=523 // pred_check
          _
        $region552: #{tpu_custom_call.1} parent=523 // pred_check_branch
          %1122 = sbr.rel (0) target = $region554
        $region553: #{tpu_custom_call.1} parent=523 // pred_region
          %1123 = vsyncadd [#allocation3], 16
        $region554: #{tpu_custom_call.1} parent=523 // pred_fallthru
          _
      $region524: #{tpu_custom_call.1} parent=43 // pred_fallthru
        _
      %p1124 = scmp.ge.s32.totalorder %s373, 0
      // Predicated region
      $region555: #{tpu_custom_call.1} parent=43 // pred_check
        %p1125 = pneg %p1124
      $region556: #{tpu_custom_call.1} parent=43 // pred_check_branch
        %1127 = sbr.rel (%p1125) target = $region558
      $region557: #{tpu_custom_call.1} parent=43 // pred_region
        %s1128 = scalar_lea.vmem %s8, %s373
        %s1129 = scalar_lea.vmem [#allocation2], 15
        %p1131 = scmp.lt.u32.totalorder 1, 8
        %p1132 = pneg %p1131
        // Predicated region
        $region559: #{tpu_custom_call.1} parent=557 // pred_check
          _
        $region560: #{tpu_custom_call.1} parent=557 // pred_check_branch
          %1134 = sbr.rel (%p1131) target = $region562
        $region561: #{tpu_custom_call.1} parent=557 // pred_region
          %s1149 = sand.u32 1, 7
          %p1150 = scmp.eq.s32.totalorder %s1149, 0
          %p1151 = pneg %p1150
          // Predicated region
          $region574: #{tpu_custom_call.1} parent=561 // pred_check
            _
          $region575: #{tpu_custom_call.1} parent=561 // pred_check_branch
            %1153 = sbr.rel (%p1150) target = $region577
          $region576: #{tpu_custom_call.1} parent=561 // pred_region
            %s1154 = sand.u32 1, 7
            %s1155 = ssub.s32 1, %s1154
            %s1156 = scalar_lea.vmem %s1128, %s1155
            %s1157 = ssub.s32 1, %s1154
            %s1158 = scalar_lea.vmem %s1129, %s1157 [#allocation2]
            %s1159 = sshllo.u32 0, %s1154
            loop: start=0, step=1, limit=1
            $region578: #{tpu_custom_call.1} parent=576 // loop_pre_header
              _
            $region579: #{tpu_custom_call.1} parent=576 // loop_header
              %s1161 = sphi 0, %s1165
              %p1162 = scmp.ge.s32.totalorder %s1161, 1
              %s1166 = sphi %s1156, %s1156
              %s1167 = sphi %s1158, %s1158
            $region580: #{tpu_custom_call.1} parent=576 // loop_header_branch
              %1164 = sbr.rel (%p1162) target = $region584
            $region581: #{tpu_custom_call.1} parent=576 // loop_body
              %v1168 = vld [vmem:[%s1166] sm:%s1159]
              %1169 = vst [vmem:[%s1167] sm:%s1159] %v1168
            $region582: #{tpu_custom_call.1} parent=576 // loop_footer
              %s1165 = sadd.s32 1, %s1161
            $region583: #{tpu_custom_call.1} parent=576 // loop_footer_branch
              %1160 = sbr.rel target = $region579
            $region584: #{tpu_custom_call.1} parent=576 // loop_exit
              _
          $region577: #{tpu_custom_call.1} parent=561 // pred_fallthru
            _
        $region562: #{tpu_custom_call.1} parent=557 // pred_fallthru
          _
        // Predicated region
        $region563: #{tpu_custom_call.1} parent=557 // pred_check
          %p1135 = pneg %p1131
        $region564: #{tpu_custom_call.1} parent=557 // pred_check_branch
          %1137 = sbr.rel (%p1135) target = $region566
        $region565: #{tpu_custom_call.1} parent=557 // pred_region
          %s1138 = sshllo.u32 0, 1
          loop: start=0, step=1, limit=1
          $region567: #{tpu_custom_call.1} parent=565 // loop_pre_header
            _
          $region568: #{tpu_custom_call.1} parent=565 // loop_header
            %s1140 = sphi 0, %s1144
            %p1141 = scmp.ge.s32.totalorder %s1140, 1
            %s1145 = sphi %s1128, %s1128
            %s1146 = sphi %s1129, %s1129
          $region569: #{tpu_custom_call.1} parent=565 // loop_header_branch
            %1143 = sbr.rel (%p1141) target = $region573
          $region570: #{tpu_custom_call.1} parent=565 // loop_body
            %v1147 = vld [vmem:[%s1145] sm:%s1138]
            %1148 = vst [vmem:[%s1146] sm:%s1138] %v1147
          $region571: #{tpu_custom_call.1} parent=565 // loop_footer
            %s1144 = sadd.s32 1, %s1140
          $region572: #{tpu_custom_call.1} parent=565 // loop_footer_branch
            %1139 = sbr.rel target = $region568
          $region573: #{tpu_custom_call.1} parent=565 // loop_exit
            _
        $region566: #{tpu_custom_call.1} parent=557 // pred_fallthru
          _
        // Predicated region
        $region585: #{tpu_custom_call.1} parent=557 // pred_check
          _
        $region586: #{tpu_custom_call.1} parent=557 // pred_check_branch
          %1172 = sbr.rel (0) target = $region588
        $region587: #{tpu_custom_call.1} parent=557 // pred_region
          %1173 = vsyncadd [#allocation3], 16
        $region588: #{tpu_custom_call.1} parent=557 // pred_fallthru
          _
      $region558: #{tpu_custom_call.1} parent=43 // pred_fallthru
        _
      %v1174 = vld [vmem:[%s6] sm:$0x1]
      %v1175 = vld [vmem:[%s6 + $0x1] sm:$0x1]
      %v1176 = vld [vmem:[%s321] sm:$0xff]
      %v1177 = vld [vmem:[%s321 + $0x8] sm:$0xff]
      %v1178 = vld [vmem:[%s321 + $0x18] sm:$0xff]
      %v1179 = vld [vmem:[%s321 + $0x20] sm:$0xff]
      %v1180 = vld [vmem:[%s314] sm:$0xff]
      %v1181 = vld [vmem:[%s314 + $0x8] sm:$0xff]
      %v1182 = vld [vmem:[%s314 + $0x10] sm:$0xff]
      %v1183 = vld [vmem:[%s314 + $0x18] sm:$0xff]
      %vm1184 = vcmp.eq.s32.totalorder %v1176, 2
      %vm1185 = vcmp.eq.s32.totalorder %v1177, 2
      %vm1186 = vcmp.eq.s32.totalorder %v1178, 2
      %vm1187 = vcmp.eq.s32.totalorder %v1179, 2
      %vm1188 = vcmp.eq.s32.totalorder %v1176, 1
      %vm1189 = vcmp.eq.s32.totalorder %v1177, 1
      %vm1190 = vcmp.eq.s32.totalorder %v1178, 1
      %vm1191 = vcmp.eq.s32.totalorder %v1179, 1
      %v1192 = vsel %vm1188, 1, 0
      %v1193 = vsel %vm1189, 1, 0
      %v1194 = vsel %vm1190, 1, 0
      %v1195 = vsel %vm1191, 1, 0
      %1196 = vset.pattern.permute.xlu0 0
      %1197 = vperm.xlu0 %1196, %v1192
      %v1198 = vpop.permute.xlu0 %1197
      %1199 = vset.pattern.permute.xlu0 0
      %1200 = vperm.xlu0 %1199, %v1193
      %v1201 = vpop.permute.xlu0 %1200
      %1202 = vset.pattern.permute.xlu0 0
      %1203 = vperm.xlu0 %1202, %v1194
      %v1204 = vpop.permute.xlu0 %1203
      %1205 = vset.pattern.permute.xlu0 0
      %1206 = vperm.xlu0 %1205, %v1195
      %v1207 = vpop.permute.xlu0 %1206
      %vm1208 = vcmp.eq.s32.totalorder %v1198, 1
      %vm1209 = vcmp.eq.s32.totalorder %v1201, 1
      %vm1210 = vcmp.eq.s32.totalorder %v1204, 1
      %vm1211 = vcmp.eq.s32.totalorder %v1207, 1
      %v1212 = vlaneseq
      %v1213 = vshrl.u32 %v1212, 7
      %v1214 = vsub.s32 0, %v1213
      %v1215 = vrot.slane %v1174, %v1214
      %v1216 = vsel %vm1208, %v1180, %v1215
      %v1217 = vsel %vm1209, %v1181, %v1215
      %v1218 = vsel %vm1210, %v1182, %v1215
      %v1219 = vsel %vm1211, %v1183, %v1215
      %v1220 = vsel %vm1184, 1, 0
      %v1221 = vsel %vm1185, 1, 0
      %v1222 = vsel %vm1186, 1, 0
      %v1223 = vsel %vm1187, 1, 0
      %1224 = vset.pattern.permute.xlu0 0
      %1225 = vperm.xlu0 %1224, %v1220
      %v1226 = vpop.permute.xlu0 %1225
      %1227 = vset.pattern.permute.xlu0 0
      %1228 = vperm.xlu0 %1227, %v1221
      %v1229 = vpop.permute.xlu0 %1228
      %1230 = vset.pattern.permute.xlu0 0
      %1231 = vperm.xlu0 %1230, %v1222
      %v1232 = vpop.permute.xlu0 %1231
      %1233 = vset.pattern.permute.xlu0 0
      %1234 = vperm.xlu0 %1233, %v1223
      %v1235 = vpop.permute.xlu0 %1234
      %vm1236 = vcmp.eq.s32.totalorder %v1226, 1
      %vm1237 = vcmp.eq.s32.totalorder %v1229, 1
      %vm1238 = vcmp.eq.s32.totalorder %v1232, 1
      %vm1239 = vcmp.eq.s32.totalorder %v1235, 1
      %v1240 = vlaneseq
      %v1241 = vshrl.u32 %v1240, 7
      %v1242 = vsub.s32 0, %v1241
      %v1243 = vrot.slane %v1175, %v1242
      %v1244 = vsel %vm1236, %v1243, %v1216
      %v1245 = vsel %vm1237, %v1243, %v1217
      %v1246 = vsel %vm1238, %v1243, %v1218
      %v1247 = vsel %vm1239, %v1243, %v1219
      %vm1248 = vcmask 261120
      %1249 = vst.msk [vmem:[%s340 + $0x8] sm:$0xff] %vm1248, %v1244
      %1250 = vst.msk [vmem:[%s340 + $0x10] sm:$0xff] %vm1248, %v1245
      %1251 = vst.msk [vmem:[%s340 + $0x28] sm:$0xff] %vm1248, %v1246
      %1252 = vst.msk [vmem:[%s340 + $0x30] sm:$0xff] %vm1248, %v1247
      %v1253 = vld [vmem:[%s321 + $0x10] sm:$0x1]
      %v1254 = vld [vmem:[%s321 + $0x28] sm:$0x1]
      %vm1255 = vcmp.eq.s32.totalorder %v1253, 2
      %vm1256 = vcmp.eq.s32.totalorder %v1254, 2
      %v1257 = vsel %vm1255, 1, 0
      %v1258 = vsel %vm1256, 1, 0
      %1259 = vset.pattern.permute.xlu0 0
      %1260 = vperm.xlu0 %1259, %v1257
      %v1261 = vpop.permute.xlu0 %1260
      %1262 = vset.pattern.permute.xlu0 0
      %1263 = vperm.xlu0 %1262, %v1258
      %v1264 = vpop.permute.xlu0 %1263
      %vm1265 = vcmp.eq.s32.totalorder %v1261, 1
      %vm1266 = vcmp.eq.s32.totalorder %v1264, 1
      %v1267 = vsel %vm1265, %v1175, %v1174
      %v1268 = vsel %vm1266, %v1175, %v1174
      %vm1269 = vcmask 253952
      %1270 = vst.msk [vmem:[%s340 + $0x18] sm:$0x1] %vm1269, %v1267
      %1271 = vst.msk [vmem:[%s340 + $0x38] sm:$0x1] %vm1269, %v1268
      // While loop
      $region589: #{tpu_custom_call.1} parent=43 // loop_pre_header
        _
      $region590: #{tpu_custom_call.1} parent=43 // loop_header
        %s1273 = sphi 0, %s1275
        %p1274 = scmp.ge.s32.totalorder %s1273, %s374
      $region591: #{tpu_custom_call.1} parent=43 // loop_header_branch
        %1277 = sbr.rel (%p1274) target = $region595
      $region592: #{tpu_custom_call.1} parent=43 // loop_body
        %s1278 = smul.u32 1, 1
        %s1279 = sshll.u32 %s1278, 4
        %1280 = dma.done [#allocation3], %s1279
      $region593: #{tpu_custom_call.1} parent=43 // loop_footer
        %s1275 = sadd.s32 %s1273, 1
      $region594: #{tpu_custom_call.1} parent=43 // loop_footer_branch
        %1272 = sbr.rel target = $region590
      $region595: #{tpu_custom_call.1} parent=43 // loop_exit
        _
      %v1281 = vld [vmem:[#allocation2] sm:$0xff]
      %v1282 = vld [vmem:[#allocation2 + $0x8] sm:$0xff]
      %v1283 = vld [vmem:[%s333] sm:$0xff]
      %v1284 = vld [vmem:[%s333 + $0x8] sm:$0xff]
      %v1285 = vld [vmem:[%s7] sm:$0xff]
      %vm1286 = vcmask 64512
      %v1288 = vsel %vm1286, %v1283, 0
      %v1291 = vsel %vm1286, %v1284, 0
      %1293 = vmatprep.subr.mxu0 0.0
      %1294 = vmatpush1.msra.mxu0 %v1285
      %1295 = vmatprep.subr.mxu0 0.0
      %1296 = vmatpush1.msra.mxu0 0.0
      %1297 = vmatprep.subr.mxu0 0.0
      %1298 = vmatpush1.msra.mxu0 0.0
      %1299 = vmatprep.subr.mxu0 0.0
      %1300 = vmatpush1.msra.mxu0 0.0
      %1301 = vmatprep.subr.mxu0 0.0
      %1302 = vmatpush1.msra.mxu0 0.0
      %1303 = vmatprep.subr.mxu0 0.0
      %1304 = vmatpush1.msra.mxu0 0.0
      %1305 = vmatprep.subr.mxu0 0.0
      %1306 = vmatpush1.msra.mxu0 0.0
      %1307 = vmatprep.subr.mxu0 0.0
      %1308 = vmatpush1.msra.mxu0 0.0
      %1309 = vmatprep.subr.mxu0 0.0
      %1310 = vmatpush1.msra.mxu0 0.0
      %1311 = vmatprep.subr.mxu0 0.0
      %1312 = vmatpush1.msra.mxu0 0.0
      %1313 = vmatprep.subr.mxu0 0.0
      %1314 = vmatpush1.msra.mxu0 0.0
      %1315 = vmatprep.subr.mxu0 0.0
      %1316 = vmatpush1.msra.mxu0 0.0
      %1317 = vmatprep.subr.mxu0 0.0
      %1318 = vmatpush1.msra.mxu0 0.0
      %1319 = vmatprep.subr.mxu0 0.0
      %1320 = vmatpush1.msra.mxu0 0.0
      %1321 = vmatprep.subr.mxu0 0.0
      %1322 = vmatpush1.msra.mxu0 0.0
      %1323 = vmatprep.subr.mxu0 0.0
      %1324 = vmatpush1.msra.mxu0 0.0
      %1325 = vmatprep.subr.mxu0 0.0
      %1326 = vmatpush1.msra.mxu0 0.0
      %1327 = vmatprep.subr.mxu0 0.0
      %1328 = vmatpush1.msra.mxu0 0.0
      %1329 = vmatprep.subr.mxu0 0.0
      %1330 = vmatpush1.msra.mxu0 0.0
      %1331 = vmatprep.subr.mxu0 0.0
      %1332 = vmatpush1.msra.mxu0 0.0
      %1333 = vmatprep.subr.mxu0 0.0
      %1334 = vmatpush1.msra.mxu0 0.0
      %1335 = vmatprep.subr.mxu0 0.0
      %1336 = vmatpush1.msra.mxu0 0.0
      %1337 = vmatprep.subr.mxu0 0.0
      %1338 = vmatpush1.msra.mxu0 0.0
      %1339 = vmatprep.subr.mxu0 0.0
      %1340 = vmatpush1.msra.mxu0 0.0
      %1341 = vmatprep.subr.mxu0 0.0
      %1342 = vmatpush1.msra.mxu0 0.0
      %1343 = vmatprep.subr.mxu0 0.0
      %1344 = vmatpush1.msra.mxu0 0.0
      %1345 = vmatprep.subr.mxu0 0.0
      %1346 = vmatpush1.msra.mxu0 0.0
      %1347 = vmatprep.subr.mxu0 0.0
      %1348 = vmatpush1.msra.mxu0 0.0
      %1349 = vmatprep.subr.mxu0 0.0
      %1350 = vmatpush1.msra.mxu0 0.0
      %1351 = vmatprep.subr.mxu0 0.0
      %1352 = vmatpush1.msra.mxu0 0.0
      %1353 = vmatprep.subr.mxu0 0.0
      %1354 = vmatpush1.msra.mxu0 0.0
      %1355 = vmatprep.subr.mxu0 0.0
      %1356 = vmatpush1.msra.mxu0 0.0
      %1357 = vmatprep.mubr.f32.mxu0 0.0
      %1358 = vmatmul.mubr.f32.gmra.mrb[0].mxu0 %v1288
      %v1359 = vpop.f32.mrb[0].mxu0
      %v1360 = vadd.f32 0.0, %v1359
      %v1361 = vpop.f32.mrb[0].mxu0
      %1362 = vmatprep.mubr.f32.mxu0 0.0
      %1363 = vmatmul.mubr.f32.gmra.mrb[0].mxu0 %v1291
      %v1364 = vpop.f32.mrb[0].mxu0
      %v1365 = vadd.f32 0.0, %v1364
      %v1366 = vpop.f32.mrb[0].mxu0
      %1367 = vdwg.mxu0
      %v1368 = vld [vmem:[%s327] sm:$0xff]
      %v1369 = vld [vmem:[%s327 + $0x8] sm:$0xff]
      %vm1370 = vcmp.eq.s32.totalorder %v1368, 2
      %vm1371 = vcmp.eq.s32.totalorder %v1369, 2
      %vm1372 = vcmp.eq.s32.totalorder %v1368, 1
      %vm1373 = vcmp.eq.s32.totalorder %v1369, 1
      %v1374 = vsel %vm1372, 1, 0
      %v1375 = vsel %vm1373, 1, 0
      %1376 = vset.pattern.permute.xlu0 0
      %1377 = vperm.xlu0 %1376, %v1374
      %v1378 = vpop.permute.xlu0 %1377
      %1379 = vset.pattern.permute.xlu0 0
      %1380 = vperm.xlu0 %1379, %v1375
      %v1381 = vpop.permute.xlu0 %1380
      %vm1382 = vcmp.eq.s32.totalorder %v1378, 1
      %vm1383 = vcmp.eq.s32.totalorder %v1381, 1
      %v1384 = vsel %vm1382, %v1281, %v1215
      %v1385 = vsel %vm1383, %v1282, %v1215
      %v1386 = vsel %vm1370, 1, 0
      %v1387 = vsel %vm1371, 1, 0
      %1388 = vset.pattern.permute.xlu0 0
      %1389 = vperm.xlu0 %1388, %v1386
      %v1390 = vpop.permute.xlu0 %1389
      %1391 = vset.pattern.permute.xlu0 0
      %1392 = vperm.xlu0 %1391, %v1387
      %v1393 = vpop.permute.xlu0 %1392
      %vm1394 = vcmp.eq.s32.totalorder %v1390, 1
      %vm1395 = vcmp.eq.s32.totalorder %v1393, 1
      %v1396 = vsel %vm1394, %v1360, %v1384
      %v1397 = vsel %vm1395, %v1365, %v1385
      %1398 = vst.msk [vmem:[%s340] sm:$0xff] %vm1248, %v1396
      %1399 = vst.msk [vmem:[%s340 + $0x20] sm:$0xff] %vm1248, %v1397
      %s1400 = smul.u32 2, %s30
      %p1401 = scmp.lt.s32.totalorder %s1400, 3
      %s1402 = scalar_select %p1401, %s1400, 3
      %s1403 = smul.addr %s1402, 4
      %s1404 = smul.addr %s1403, 8
      %s1405 = scalar_lea.vmem %s9, %s1404
      // Predicated region
      $region596: #{tpu_custom_call.1} parent=43 // pred_check
        %p1406 = pneg %p194
      $region597: #{tpu_custom_call.1} parent=43 // pred_check_branch
        %1408 = sbr.rel (%p1406) target = $region599
      $region598: #{tpu_custom_call.1} parent=43 // pred_region
        %s1409 = smul.u32 2, %s30
      $region599: #{tpu_custom_call.1} parent=43 // pred_fallthru
        _
    $region44: #{tpu_custom_call.1} parent=5 // pred_fallthru
      _
    %p1410 = scmp.le.s32.totalorder 2, %s25
    // Predicated region
    $region600: #{tpu_custom_call.1} parent=5 // pred_check
      %p1411 = pneg %p1410
    $region601: #{tpu_custom_call.1} parent=5 // pred_check_branch
      %1413 = sbr.rel (%p1411) target = $region603
    $region602: #{tpu_custom_call.1} parent=5 // pred_region
      %s1414 = ssub.s32 %s25, 2
      // Predicated region
      $region604: #{tpu_custom_call.1} parent=602 // pred_check
        %p1415 = pneg %p200
      $region605: #{tpu_custom_call.1} parent=602 // pred_check_branch
        %1417 = sbr.rel (%p1415) target = $region607
      $region606: #{tpu_custom_call.1} parent=602 // pred_region
        %s1418 = smul.u32 2, %s31
        %p1419 = scmp.lt.s32.totalorder %s1418, 3
        %s1420 = scalar_select %p1419, %s1418, 3
        %s1421 = smul.addr %s1420, 4
        %s1422 = smul.addr %s1421, 8
        %s1423 = scalar_lea.vmem %s9, %s1422
      $region607: #{tpu_custom_call.1} parent=602 // pred_fallthru
        _
    $region603: #{tpu_custom_call.1} parent=5 // pred_fallthru
      _
  $region6: #{tpu_custom_call.1} parent=0 // loop_footer
    %s29 = sadd.s32 1, %s25
  $region7: #{tpu_custom_call.1} parent=0 // loop_footer_branch
    %24 = sbr.rel target = $region3
  $region8: #{tpu_custom_call.1} parent=0 // loop_exit
    _
  %1424 = vsyncmov [#allocation3]
  %s1425 = vpop.sfrf %1424
  %p1426 = scmp.eq.s32.totalorder %s1425, 0
  %p1427 = pneg %p1426
  %1429 = shalt.err (%p1427)

</llo_original>
